<compile_context>
chip_gen: v7x
topology: tpu7x:2x2x1
jax: 0.10.0
libtpu: 0.0.40
codegen_flags: <defaults>
</compile_context>

<pallas_src>
import functools

import jax
import jax.numpy as jnp
from jax.experimental import pallas as pl
from jax.experimental.pallas import tpu as pltpu


def _er_kernel(x_ref,
               w1_ref, b1_ref,
               w2_ref, b2_ref,
               w3_ref, b3_ref,
               w4_ref, b4_ref,
               o_ref):
    # x tile: (C_in, tile_n) bf16.  Each layer is  W @ h  on the MXU with bf16
    # operands and f32 accumulation, followed by an f32 bias(+ReLU) epilogue.
    h = x_ref[...]
    # Layer 1: conv1 (C -> C) + bn1 (folded) + relu
    h = jnp.dot(w1_ref[...], h, preferred_element_type=jnp.float32)
    h = jnp.maximum(h + b1_ref[...], 0.0).astype(jnp.bfloat16)
    # Layer 2: conv2 (C -> C/2) + bn2 (folded) + relu
    h = jnp.dot(w2_ref[...], h, preferred_element_type=jnp.float32)
    h = jnp.maximum(h + b2_ref[...], 0.0).astype(jnp.bfloat16)
    # Layer 3: conv3 (C/2 -> C/4) + bn3 (folded) + relu
    h = jnp.dot(w3_ref[...], h, preferred_element_type=jnp.float32)
    h = jnp.maximum(h + b3_ref[...], 0.0).astype(jnp.bfloat16)
    # Layer 4: conv4 (C/4 -> out_pad) + bias (no BN / relu)
    h = jnp.dot(w4_ref[...], h, preferred_element_type=jnp.float32)
    o_ref[...] = (h + b4_ref[...]).astype(o_ref.dtype)


def er_estimate_forward(x_bcn, params, *, out_dim=None, tile_n=2048,
                        vmem_limit_bytes=None):
    """x_bcn: (B, C_in, N), PyTorch Conv1d (NCW) layout.  Returns (B, out, N) f32.

    x is ideally supplied already in bf16 (the MXU operand dtype) so the kernel
    reads half the HBM bytes; an f32 input is cast here as a fallback (one
    extra XLA pass over x).
    """
    B, C_in, N = x_bcn.shape
    out_pad = params["w4"].shape[0]
    assert tile_n % 128 == 0, "tile_n must be a multiple of 128"

    if x_bcn.dtype != jnp.bfloat16:
        x_bcn = x_bcn.astype(jnp.bfloat16)

    # Clamp the tile to the 128-aligned point count (no padding of x; Pallas
    # handles the ragged last block itself).
    n_aligned = ((N + 127) // 128) * 128
    tn = min(tile_n, n_aligned)
    # v7x shards "parallel" grid axes across its 2 TensorCores: make sure there
    # are at least 2 programs when the workload allows it.
    if B * ((N + tn - 1) // tn) < 2:
        half = ((n_aligned // 2 + 127) // 128) * 128
        if 128 <= half < tn:
            tn = half
    grid = (B, pl.cdiv(N, tn))

    # Weights are already bf16 from make_params; astype is a no-op then and a
    # safety net for f32-supplied params.  Biases (and epilogue math) stay f32.
    w1 = params["w1"].astype(jnp.bfloat16)
    w2 = params["w2"].astype(jnp.bfloat16)
    w3 = params["w3"].astype(jnp.bfloat16)
    w4 = params["w4"].astype(jnp.bfloat16)
    b1, b2, b3, b4 = params["b1"], params["b2"], params["b3"], params["b4"]

    full = lambda arr: pl.BlockSpec(arr.shape, lambda b, j: (0, 0))

    out = pl.pallas_call(
        _er_kernel,
        out_shape=jax.ShapeDtypeStruct((B, out_pad, N), jnp.float32),
        grid_spec=pltpu.PrefetchScalarGridSpec(
            num_scalar_prefetch=0,
            grid=grid,
            in_specs=[
                # x tile: batch dim squeezed, channels on sublanes, points on lanes.
                pl.BlockSpec((pl.Squeezed(), C_in, tn), lambda b, j: (b, 0, j)),
                full(w1), full(b1),
                full(w2), full(b2),
                full(w3), full(b3),
                full(w4), full(b4),
            ],
            out_specs=pl.BlockSpec((pl.Squeezed(), out_pad, tn),
                                   lambda b, j: (b, 0, j)),
        ),
        compiler_params=pltpu.CompilerParams(
            dimension_semantics=("parallel", "parallel"),
            vmem_limit_bytes=vmem_limit_bytes),
    )(x_bcn, w1, b1, w2, b2, w3, b3, w4, b4)

    if out_dim is not None and out_dim != out_pad:
        out = out[:, :out_dim, :]   # drop the sublane-padding rows of layer 4
    return out


def _fold_bn(conv_w, conv_b, gamma, beta, mean, var, eps=1e-5):
    """Fold Conv1d(k=1) + eval-mode BatchNorm1d into one affine layer.

    Returns (W_eff, shift) with W_eff (C_out, C_in) and shift (C_out, 1) such
    that bn(conv(x)) == W_eff @ x + shift per point.  Exact: the per-channel BN
    scale commutes into the rows of W.
    """
    scale = gamma / jnp.sqrt(var + eps)                 # (C_out,)
    w_eff = conv_w * scale[:, None]                     # (C_out, C_in)
    shift = (conv_b - mean) * scale + beta              # (C_out,)
    return w_eff, shift[:, None]


def make_params(key, bottleneck_size=256, output_dim=3):
    """Deterministic synthetic parameters matching EREstimate.__init__ shapes.

    BN is folded into the conv weights, weights are pre-cast to bf16 (MXU
    operand dtype), biases kept f32, and layer-4's output channels are padded
    up to a multiple of 8 with zero rows for sublane-aligned stores.
    """
    C = bottleneck_size
    dims = [(C, C), (C, C // 2), (C // 2, C // 4), (C // 4, output_dim)]
    ki = iter(jax.random.split(key, 20))  # 4*2 conv keys + 3*4 bn keys

    def conv_init(c_in, c_out):
        bound = 1.0 / float(c_in) ** 0.5
        w = jax.random.uniform(next(ki), (c_out, c_in), jnp.float32, -bound, bound)
        b = jax.random.uniform(next(ki), (c_out,), jnp.float32, -bound, bound)
        return w, b

    def bn_init(c):
        gamma = 1.0 + 0.1 * jax.random.normal(next(ki), (c,), jnp.float32)
        beta = 0.1 * jax.random.normal(next(ki), (c,), jnp.float32)
        mean = 0.05 * jax.random.normal(next(ki), (c,), jnp.float32)
        var = jnp.abs(1.0 + 0.1 * jax.random.normal(next(ki), (c,), jnp.float32))
        return gamma, beta, mean, var

    params = {}
    # Layers 1-3: conv + bn folded into (W_eff bf16, shift f32).
    for li, (c_in, c_out) in enumerate(dims[:3], start=1):
        w, b = conv_init(c_in, c_out)
        g, bt, m, v = bn_init(c_out)
        w_eff, shift = _fold_bn(w, b, g, bt, m, v)
        params[f"w{li}"] = w_eff.astype(jnp.bfloat16)
        params[f"b{li}"] = shift
    # Layer 4: plain conv, output channels zero-padded up to a multiple of 8.
    w4, b4 = conv_init(*dims[3])
    out_pad = ((output_dim + 7) // 8) * 8
    w4 = jnp.pad(w4, ((0, out_pad - output_dim), (0, 0)))
    b4 = jnp.pad(b4, (0, out_pad - output_dim))
    params["w4"] = w4.astype(jnp.bfloat16)
    params["b4"] = b4[:, None].astype(jnp.float32)
    return params


def _reference(x_bcn, params):
    """Pure-JAX f32 reference of the folded forward pass (NCW layout).

    Returns the padded (B, out_pad, N) result; slice the real rows outside.
    """
    h = x_bcn
    for li in range(1, 4):
        w = params[f"w{li}"].astype(jnp.float32)
        h = jnp.einsum("oc,bcn->bon", w, h) + params[f"b{li}"][None]
        h = jnp.maximum(h, 0.0)
    w4 = params["w4"].astype(jnp.float32)
    return jnp.einsum("oc,bcn->bon", w4, h) + params["b4"][None]


if __name__ == "__main__":
    # Small shapes consistent with the module: x is (B, bottleneck_size, N_points).
    # N_pts=500 deliberately exercises the ragged (non-128-multiple) last block.
    B, C, N_pts, OUT = 2, 256, 500, 3
    key = jax.random.PRNGKey(0)
    kx, kp = jax.random.split(key)
    x = jax.random.normal(kx, (B, C, N_pts), jnp.float32)
    params = make_params(kp, bottleneck_size=C, output_dim=OUT)

    # Hand the kernel bf16 x (halves the dominant HBM read); in the real model
    # the producer of x would emit bf16 directly.
    x_bf16 = x.astype(jnp.bfloat16)

    fwd = jax.jit(functools.partial(er_estimate_forward, out_dim=OUT, tile_n=2048))
    y = fwd(x_bf16, params)
    jax.block_until_ready(y)

    y_ref = _reference(x_bf16.astype(jnp.float32), params)[:, :OUT, :]
    assert y.shape == (B, OUT, N_pts), y.shape
    # bf16 MXU operands / chained bf16 activations -> looser tolerance than f32.
    assert jnp.allclose(y, y_ref, atol=3e-2, rtol=3e-2), "mismatch vs reference"
    print("KERNEL_OK")
</pallas_src>

<mosaic_0001>
module attributes {stable_mosaic.version = 11 : i64} {
  func.func @_er_kernel(%arg0: i32, %arg1: i32, %arg2: memref<1x256x512xbf16, #tpu.memory_space<vmem>>, %arg3: memref<256x256xbf16, #tpu.memory_space<vmem>>, %arg4: memref<256x1xf32, #tpu.memory_space<vmem>>, %arg5: memref<128x256xbf16, #tpu.memory_space<vmem>>, %arg6: memref<128x1xf32, #tpu.memory_space<vmem>>, %arg7: memref<64x128xbf16, #tpu.memory_space<vmem>>, %arg8: memref<64x1xf32, #tpu.memory_space<vmem>>, %arg9: memref<8x64xbf16, #tpu.memory_space<vmem>>, %arg10: memref<8x1xf32, #tpu.memory_space<vmem>>, %arg11: memref<1x8x512xf32, #tpu.memory_space<vmem>>) attributes {dimension_semantics = [#tpu.dimension_semantics<parallel>, #tpu.dimension_semantics<parallel>], iteration_bounds = array<i64: 2, 1>, scalar_prefetch = 0 : i64, scratch_operands = 0 : i64, tpu.core_type = #tpu.core_type<tc>, window_params = [{transform_indices = @transform_0, window_bounds = array<i64: 1, 256, 512>}, {pipeline_mode = #tpu.pipeline_mode<synchronous>, transform_indices = @transform_1, window_bounds = array<i64: 256, 256>}, {pipeline_mode = #tpu.pipeline_mode<synchronous>, transform_indices = @transform_2, window_bounds = array<i64: 256, 1>}, {pipeline_mode = #tpu.pipeline_mode<synchronous>, transform_indices = @transform_3, window_bounds = array<i64: 128, 256>}, {pipeline_mode = #tpu.pipeline_mode<synchronous>, transform_indices = @transform_4, window_bounds = array<i64: 128, 1>}, {pipeline_mode = #tpu.pipeline_mode<synchronous>, transform_indices = @transform_5, window_bounds = array<i64: 64, 128>}, {pipeline_mode = #tpu.pipeline_mode<synchronous>, transform_indices = @transform_6, window_bounds = array<i64: 64, 1>}, {pipeline_mode = #tpu.pipeline_mode<synchronous>, transform_indices = @transform_7, window_bounds = array<i64: 8, 64>}, {pipeline_mode = #tpu.pipeline_mode<synchronous>, transform_indices = @transform_8, window_bounds = array<i64: 8, 1>}, {transform_indices = @transform_9, window_bounds = array<i64: 1, 8, 512>}]} {
    %c0 = arith.constant 0 : index
    %c0_0 = arith.constant 0 : index
    %c0_1 = arith.constant 0 : index
    %0 = vector.load %arg2[%c0, %c0_0, %c0_1] : memref<1x256x512xbf16, #tpu.memory_space<vmem>>, vector<1x256x512xbf16>
    %1 = vector.shape_cast %0 : vector<1x256x512xbf16> to vector<256x512xbf16>
    %c0_2 = arith.constant 0 : index
    %c0_3 = arith.constant 0 : index
    %2 = vector.load %arg3[%c0_2, %c0_3] : memref<256x256xbf16, #tpu.memory_space<vmem>>, vector<256x256xbf16>
    %cst = arith.constant dense<0.000000e+00> : vector<256x512xf32>
    %3 = tpu.matmul %2, %1, %cst {dimension_numbers = #tpu.dot_dimension_numbers<[1], [0], [0], [1], [0, 0, 1, 1], [], []>} : vector<256x256xbf16>, vector<256x512xbf16>, vector<256x512xf32> -> vector<256x512xf32>
    %c0_4 = arith.constant 0 : index
    %c0_5 = arith.constant 0 : index
    %4 = vector.load %arg4[%c0_4, %c0_5] : memref<256x1xf32, #tpu.memory_space<vmem>>, vector<256x1xf32>
    %5 = vector.broadcast %4 : vector<256x1xf32> to vector<256x512xf32>
    %6 = arith.addf %3, %5 : vector<256x512xf32>
    %cst_6 = arith.constant 0.000000e+00 : f32
    %7 = vector.broadcast %cst_6 : f32 to vector<256x512xf32>
    %8 = arith.maximumf %6, %7 : vector<256x512xf32>
    %9 = arith.truncf %8 : vector<256x512xf32> to vector<256x512xbf16>
    %c0_7 = arith.constant 0 : index
    %c0_8 = arith.constant 0 : index
    %10 = vector.load %arg5[%c0_7, %c0_8] : memref<128x256xbf16, #tpu.memory_space<vmem>>, vector<128x256xbf16>
    %cst_9 = arith.constant dense<0.000000e+00> : vector<128x512xf32>
    %11 = tpu.matmul %10, %9, %cst_9 {dimension_numbers = #tpu.dot_dimension_numbers<[1], [0], [0], [1], [0, 0, 1, 1], [], []>} : vector<128x256xbf16>, vector<256x512xbf16>, vector<128x512xf32> -> vector<128x512xf32>
    %c0_10 = arith.constant 0 : index
    %c0_11 = arith.constant 0 : index
    %12 = vector.load %arg6[%c0_10, %c0_11] : memref<128x1xf32, #tpu.memory_space<vmem>>, vector<128x1xf32>
    %13 = vector.broadcast %12 : vector<128x1xf32> to vector<128x512xf32>
    %14 = arith.addf %11, %13 : vector<128x512xf32>
    %cst_12 = arith.constant 0.000000e+00 : f32
    %15 = vector.broadcast %cst_12 : f32 to vector<128x512xf32>
    %16 = arith.maximumf %14, %15 : vector<128x512xf32>
    %17 = arith.truncf %16 : vector<128x512xf32> to vector<128x512xbf16>
    %c0_13 = arith.constant 0 : index
    %c0_14 = arith.constant 0 : index
    %18 = vector.load %arg7[%c0_13, %c0_14] : memref<64x128xbf16, #tpu.memory_space<vmem>>, vector<64x128xbf16>
    %cst_15 = arith.constant dense<0.000000e+00> : vector<64x512xf32>
    %19 = tpu.matmul %18, %17, %cst_15 {dimension_numbers = #tpu.dot_dimension_numbers<[1], [0], [0], [1], [0, 0, 1, 1], [], []>} : vector<64x128xbf16>, vector<128x512xbf16>, vector<64x512xf32> -> vector<64x512xf32>
    %c0_16 = arith.constant 0 : index
    %c0_17 = arith.constant 0 : index
    %20 = vector.load %arg8[%c0_16, %c0_17] : memref<64x1xf32, #tpu.memory_space<vmem>>, vector<64x1xf32>
    %21 = vector.broadcast %20 : vector<64x1xf32> to vector<64x512xf32>
    %22 = arith.addf %19, %21 : vector<64x512xf32>
    %cst_18 = arith.constant 0.000000e+00 : f32
    %23 = vector.broadcast %cst_18 : f32 to vector<64x512xf32>
    %24 = arith.maximumf %22, %23 : vector<64x512xf32>
    %25 = arith.truncf %24 : vector<64x512xf32> to vector<64x512xbf16>
    %c0_19 = arith.constant 0 : index
    %c0_20 = arith.constant 0 : index
    %26 = vector.load %arg9[%c0_19, %c0_20] : memref<8x64xbf16, #tpu.memory_space<vmem>>, vector<8x64xbf16>
    %cst_21 = arith.constant dense<0.000000e+00> : vector<8x512xf32>
    %27 = tpu.matmul %26, %25, %cst_21 {dimension_numbers = #tpu.dot_dimension_numbers<[1], [0], [0], [1], [0, 0, 1, 1], [], []>} : vector<8x64xbf16>, vector<64x512xbf16>, vector<8x512xf32> -> vector<8x512xf32>
    %c0_22 = arith.constant 0 : index
    %c0_23 = arith.constant 0 : index
    %28 = vector.load %arg10[%c0_22, %c0_23] : memref<8x1xf32, #tpu.memory_space<vmem>>, vector<8x1xf32>
    %29 = vector.broadcast %28 : vector<8x1xf32> to vector<8x512xf32>
    %30 = arith.addf %27, %29 : vector<8x512xf32>
    %c0_24 = arith.constant 0 : index
    %c0_25 = arith.constant 0 : index
    %c0_26 = arith.constant 0 : index
    %31 = vector.load %arg11[%c0_24, %c0_25, %c0_26] : memref<1x8x512xf32, #tpu.memory_space<vmem>>, vector<1x8x512xf32>
    %32 = vector.shape_cast %31 : vector<1x8x512xf32> to vector<8x512xf32>
    %33 = vector.shape_cast %30 : vector<8x512xf32> to vector<1x8x512xf32>
    tpu.vector_store %arg11[%c0_24, %c0_25, %c0_26], %33 {strides = array<i32>} : memref<1x8x512xf32, #tpu.memory_space<vmem>>, vector<1x8x512xf32>,
    return
  }
  func.func @transform_0(%arg0: i32, %arg1: i32) -> (i32, i32, i32) {
    %c0_i32 = arith.constant 0 : i32
    %c0_i32_0 = arith.constant 0 : i32
    return %arg0, %c0_i32, %arg1 : i32, i32, i32
  }
  func.func @transform_1(%arg0: i32, %arg1: i32) -> (i32, i32) {
    %c0_i32 = arith.constant 0 : i32
    %c0_i32_0 = arith.constant 0 : i32
    %c0_i32_1 = arith.constant 0 : i32
    return %c0_i32, %c0_i32_0 : i32, i32
  }
  func.func @transform_2(%arg0: i32, %arg1: i32) -> (i32, i32) {
    %c0_i32 = arith.constant 0 : i32
    %c0_i32_0 = arith.constant 0 : i32
    %c0_i32_1 = arith.constant 0 : i32
    return %c0_i32, %c0_i32_0 : i32, i32
  }
  func.func @transform_3(%arg0: i32, %arg1: i32) -> (i32, i32) {
    %c0_i32 = arith.constant 0 : i32
    %c0_i32_0 = arith.constant 0 : i32
    %c0_i32_1 = arith.constant 0 : i32
    return %c0_i32, %c0_i32_0 : i32, i32
  }
  func.func @transform_4(%arg0: i32, %arg1: i32) -> (i32, i32) {
    %c0_i32 = arith.constant 0 : i32
    %c0_i32_0 = arith.constant 0 : i32
    %c0_i32_1 = arith.constant 0 : i32
    return %c0_i32, %c0_i32_0 : i32, i32
  }
  func.func @transform_5(%arg0: i32, %arg1: i32) -> (i32, i32) {
    %c0_i32 = arith.constant 0 : i32
    %c0_i32_0 = arith.constant 0 : i32
    %c0_i32_1 = arith.constant 0 : i32
    return %c0_i32, %c0_i32_0 : i32, i32
  }
  func.func @transform_6(%arg0: i32, %arg1: i32) -> (i32, i32) {
    %c0_i32 = arith.constant 0 : i32
    %c0_i32_0 = arith.constant 0 : i32
    %c0_i32_1 = arith.constant 0 : i32
    return %c0_i32, %c0_i32_0 : i32, i32
  }
  func.func @transform_7(%arg0: i32, %arg1: i32) -> (i32, i32) {
    %c0_i32 = arith.constant 0 : i32
    %c0_i32_0 = arith.constant 0 : i32
    %c0_i32_1 = arith.constant 0 : i32
    return %c0_i32, %c0_i32_0 : i32, i32
  }
  func.func @transform_8(%arg0: i32, %arg1: i32) -> (i32, i32) {
    %c0_i32 = arith.constant 0 : i32
    %c0_i32_0 = arith.constant 0 : i32
    %c0_i32_1 = arith.constant 0 : i32
    return %c0_i32, %c0_i32_0 : i32, i32
  }
  func.func @transform_9(%arg0: i32, %arg1: i32) -> (i32, i32, i32) {
    %c0_i32 = arith.constant 0 : i32
    %c0_i32_0 = arith.constant 0 : i32
    return %arg0, %c0_i32, %arg1 : i32, i32, i32
  }
}

</mosaic_0001>

<llo_original>
// kernel: er_estimate_forward.1
$region0: #{er_estimate_forward.1}
  #allocation0 [shape = 'u32[]', space=smem, size = 0x4, offset = 0x4, fixed_abs, tag = 'smem constant byte address 0x4 - core index']
  #allocation1 [shape = 'u32[144,128]{1,0:T(1,128)}', space=vmem, size = 0x12000, scoped, tag = 'internal scratch']
  %s0 = inlined_call_operand.vmem [shape: bf16[2,256,500], index: 0, kind: input, shape index: {}]
  %s1 = inlined_call_operand.vmem [shape: bf16[256,256], index: 1, kind: input, shape index: {}]
  %s2 = inlined_call_operand.vmem [shape: f32[256,1], index: 2, kind: input, shape index: {}]
  %s3 = inlined_call_operand.vmem [shape: bf16[128,256], index: 3, kind: input, shape index: {}]
  %s4 = inlined_call_operand.vmem [shape: f32[128,1], index: 4, kind: input, shape index: {}]
  %s5 = inlined_call_operand.vmem [shape: bf16[64,128], index: 5, kind: input, shape index: {}]
  %s6 = inlined_call_operand.vmem [shape: f32[64,1], index: 6, kind: input, shape index: {}]
  %s7 = inlined_call_operand.vmem [shape: bf16[8,64], index: 7, kind: input, shape index: {}]
  %s8 = inlined_call_operand.vmem [shape: f32[8,1], index: 8, kind: input, shape index: {}]
  %s9 = inlined_call_operand.vmem [shape: f32[2,8,500], index: 9, kind: output, shape index: {}]
  %s10 = sld [smem:[#allocation0]]
  $region69: #{er_estimate_forward.1} parent=0
    _
  %s12 = ssub.s32 1, %s10
  %s13 = scalar_select 0, %s12, %s10
  loop: start=0, step=1, limit=4
  $region2: #{er_estimate_forward.1} parent=0 // loop_pre_header
    _
  $region3: #{er_estimate_forward.1} parent=0 // loop_header
    %s15 = sphi 0, %s19
    %p16 = scmp.ge.s32.totalorder %s15, 4
    %s22 = sphi 0, %s34
    %s23 = sphi 0, %s30
    %s24 = sphi 0, %s22
    %s25 = sphi 0, %s23
    %s26 = sphi 0, %s24
    %s27 = sphi 0, %s25
    %s39 = sphi 0, %s41
    %s42 = sphi 0, %s39
    %s43 = sphi 0, %s42
    %s59 = sphi 0, %s43
    %s63 = sphi 0, %s63
    %s65 = sphi 0, %s63
    %s66 = sphi 0, %s65
    %s80 = sphi 0, %s66
    %s84 = sphi 0, %s84
    %s86 = sphi 0, %s84
    %s87 = sphi 0, %s86
    %s101 = sphi 0, %s87
    %s105 = sphi 0, %s105
    %s107 = sphi 0, %s105
    %s108 = sphi 0, %s107
    %s122 = sphi 0, %s108
    %s126 = sphi 0, %s126
    %s128 = sphi 0, %s126
    %s129 = sphi 0, %s128
    %s143 = sphi 0, %s129
    %s147 = sphi 0, %s147
    %s149 = sphi 0, %s147
    %s150 = sphi 0, %s149
    %s164 = sphi 0, %s150
    %s168 = sphi 0, %s168
    %s170 = sphi 0, %s168
    %s171 = sphi 0, %s170
    %s185 = sphi 0, %s171
    %s189 = sphi 0, %s189
    %s191 = sphi 0, %s189
    %s192 = sphi 0, %s191
    %s206 = sphi 0, %s192
    %s210 = sphi 0, %s210
    %s212 = sphi 0, %s210
    %s213 = sphi 0, %s212
    %s227 = sphi 0, %s213
    %s235 = sphi 0, %s237
    %s238 = sphi 0, %s235
    %s239 = sphi 0, %s238
    %s255 = sphi 0, %s239
  $region4: #{er_estimate_forward.1} parent=0 // loop_header_branch
    %18 = sbr.rel (%p16) target = $region8
  $region5: #{er_estimate_forward.1} parent=0 // loop_body
    %s20 = ssub.s32 %s15, 1
    %s21 = ssub.s32 %s15, 2
    %s28 = sadd.s32 1, %s23
    %p29 = scmp.ge.s32.totalorder %s28, 1
    %s30 = scalar_select %p29, 0, %s28
    %s31 = sadd.s32 1, %s22
    %s32 = scalar_select %p29, %s31, %s22
    %p33 = scmp.ge.s32.totalorder %s32, 2
    %s34 = scalar_select %p33, 0, %s32
    %s35 = ssub.s32 %s22, %s34
    %s36 = ssub.s32 %s23, %s30
    %s37 = sor.u32 %s35, %s36
    %p38 = scmp.eq.s32.totalorder %s37, 0
    %s40 = sadd.s32 %s39, 1
    %s41 = scalar_select %p38, %s39, %s40
    %p44 = pneg %p38
    %p45 = scmp.eq.s32.totalorder %s15, 1
    %p46 = por %p44, %p45
    %p47 = scmp.ne.s32.totalorder %s39, %s42
    %p48 = scmp.eq.s32.totalorder %s15, 0
    %p49 = por %p47, %p48
    %p50 = scmp.ne.s32.totalorder %s39, %s42
    %p51 = scmp.eq.s32.totalorder %s20, 1
    %p52 = por %p50, %p51
    %p53 = scmp.ne.s32.totalorder %s42, %s43
    %p54 = scmp.eq.s32.totalorder %s20, 0
    %p55 = por %p53, %p54
    %p56 = scmp.ne.s32.totalorder %s42, %s43
    %p57 = scmp.eq.s32.totalorder %s21, 1
    %p58 = por %p56, %p57
    %p60 = scmp.ne.s32.totalorder %s43, %s59
    %p61 = scmp.eq.s32.totalorder %s21, 0
    %p62 = por %p60, %p61
    %s64 = sadd.s32 %s63, 1
    %p67 = scmp.eq.s32.totalorder %s15, 1
    %p68 = scmp.ne.s32.totalorder %s63, %s65
    %p69 = scmp.eq.s32.totalorder %s15, 0
    %p70 = por %p68, %p69
    %p71 = scmp.ne.s32.totalorder %s63, %s65
    %p72 = scmp.eq.s32.totalorder %s20, 1
    %p73 = por %p71, %p72
    %p74 = scmp.ne.s32.totalorder %s65, %s66
    %p75 = scmp.eq.s32.totalorder %s20, 0
    %p76 = por %p74, %p75
    %p77 = scmp.ne.s32.totalorder %s65, %s66
    %p78 = scmp.eq.s32.totalorder %s21, 1
    %p79 = por %p77, %p78
    %p81 = scmp.ne.s32.totalorder %s66, %s80
    %p82 = scmp.eq.s32.totalorder %s21, 0
    %p83 = por %p81, %p82
    %s85 = sadd.s32 %s84, 1
    %p88 = scmp.eq.s32.totalorder %s15, 1
    %p89 = scmp.ne.s32.totalorder %s84, %s86
    %p90 = scmp.eq.s32.totalorder %s15, 0
    %p91 = por %p89, %p90
    %p92 = scmp.ne.s32.totalorder %s84, %s86
    %p93 = scmp.eq.s32.totalorder %s20, 1
    %p94 = por %p92, %p93
    %p95 = scmp.ne.s32.totalorder %s86, %s87
    %p96 = scmp.eq.s32.totalorder %s20, 0
    %p97 = por %p95, %p96
    %p98 = scmp.ne.s32.totalorder %s86, %s87
    %p99 = scmp.eq.s32.totalorder %s21, 1
    %p100 = por %p98, %p99
    %p102 = scmp.ne.s32.totalorder %s87, %s101
    %p103 = scmp.eq.s32.totalorder %s21, 0
    %p104 = por %p102, %p103
    %s106 = sadd.s32 %s105, 1
    %p109 = scmp.eq.s32.totalorder %s15, 1
    %p110 = scmp.ne.s32.totalorder %s105, %s107
    %p111 = scmp.eq.s32.totalorder %s15, 0
    %p112 = por %p110, %p111
    %p113 = scmp.ne.s32.totalorder %s105, %s107
    %p114 = scmp.eq.s32.totalorder %s20, 1
    %p115 = por %p113, %p114
    %p116 = scmp.ne.s32.totalorder %s107, %s108
    %p117 = scmp.eq.s32.totalorder %s20, 0
    %p118 = por %p116, %p117
    %p119 = scmp.ne.s32.totalorder %s107, %s108
    %p120 = scmp.eq.s32.totalorder %s21, 1
    %p121 = por %p119, %p120
    %p123 = scmp.ne.s32.totalorder %s108, %s122
    %p124 = scmp.eq.s32.totalorder %s21, 0
    %p125 = por %p123, %p124
    %s127 = sadd.s32 %s126, 1
    %p130 = scmp.eq.s32.totalorder %s15, 1
    %p131 = scmp.ne.s32.totalorder %s126, %s128
    %p132 = scmp.eq.s32.totalorder %s15, 0
    %p133 = por %p131, %p132
    %p134 = scmp.ne.s32.totalorder %s126, %s128
    %p135 = scmp.eq.s32.totalorder %s20, 1
    %p136 = por %p134, %p135
    %p137 = scmp.ne.s32.totalorder %s128, %s129
    %p138 = scmp.eq.s32.totalorder %s20, 0
    %p139 = por %p137, %p138
    %p140 = scmp.ne.s32.totalorder %s128, %s129
    %p141 = scmp.eq.s32.totalorder %s21, 1
    %p142 = por %p140, %p141
    %p144 = scmp.ne.s32.totalorder %s129, %s143
    %p145 = scmp.eq.s32.totalorder %s21, 0
    %p146 = por %p144, %p145
    %s148 = sadd.s32 %s147, 1
    %p151 = scmp.eq.s32.totalorder %s15, 1
    %p152 = scmp.ne.s32.totalorder %s147, %s149
    %p153 = scmp.eq.s32.totalorder %s15, 0
    %p154 = por %p152, %p153
    %p155 = scmp.ne.s32.totalorder %s147, %s149
    %p156 = scmp.eq.s32.totalorder %s20, 1
    %p157 = por %p155, %p156
    %p158 = scmp.ne.s32.totalorder %s149, %s150
    %p159 = scmp.eq.s32.totalorder %s20, 0
    %p160 = por %p158, %p159
    %p161 = scmp.ne.s32.totalorder %s149, %s150
    %p162 = scmp.eq.s32.totalorder %s21, 1
    %p163 = por %p161, %p162
    %p165 = scmp.ne.s32.totalorder %s150, %s164
    %p166 = scmp.eq.s32.totalorder %s21, 0
    %p167 = por %p165, %p166
    %s169 = sadd.s32 %s168, 1
    %p172 = scmp.eq.s32.totalorder %s15, 1
    %p173 = scmp.ne.s32.totalorder %s168, %s170
    %p174 = scmp.eq.s32.totalorder %s15, 0
    %p175 = por %p173, %p174
    %p176 = scmp.ne.s32.totalorder %s168, %s170
    %p177 = scmp.eq.s32.totalorder %s20, 1
    %p178 = por %p176, %p177
    %p179 = scmp.ne.s32.totalorder %s170, %s171
    %p180 = scmp.eq.s32.totalorder %s20, 0
    %p181 = por %p179, %p180
    %p182 = scmp.ne.s32.totalorder %s170, %s171
    %p183 = scmp.eq.s32.totalorder %s21, 1
    %p184 = por %p182, %p183
    %p186 = scmp.ne.s32.totalorder %s171, %s185
    %p187 = scmp.eq.s32.totalorder %s21, 0
    %p188 = por %p186, %p187
    %s190 = sadd.s32 %s189, 1
    %p193 = scmp.eq.s32.totalorder %s15, 1
    %p194 = scmp.ne.s32.totalorder %s189, %s191
    %p195 = scmp.eq.s32.totalorder %s15, 0
    %p196 = por %p194, %p195
    %p197 = scmp.ne.s32.totalorder %s189, %s191
    %p198 = scmp.eq.s32.totalorder %s20, 1
    %p199 = por %p197, %p198
    %p200 = scmp.ne.s32.totalorder %s191, %s192
    %p201 = scmp.eq.s32.totalorder %s20, 0
    %p202 = por %p200, %p201
    %p203 = scmp.ne.s32.totalorder %s191, %s192
    %p204 = scmp.eq.s32.totalorder %s21, 1
    %p205 = por %p203, %p204
    %p207 = scmp.ne.s32.totalorder %s192, %s206
    %p208 = scmp.eq.s32.totalorder %s21, 0
    %p209 = por %p207, %p208
    %s211 = sadd.s32 %s210, 1
    %p214 = scmp.eq.s32.totalorder %s15, 1
    %p215 = scmp.ne.s32.totalorder %s210, %s212
    %p216 = scmp.eq.s32.totalorder %s15, 0
    %p217 = por %p215, %p216
    %p218 = scmp.ne.s32.totalorder %s210, %s212
    %p219 = scmp.eq.s32.totalorder %s20, 1
    %p220 = por %p218, %p219
    %p221 = scmp.ne.s32.totalorder %s212, %s213
    %p222 = scmp.eq.s32.totalorder %s20, 0
    %p223 = por %p221, %p222
    %p224 = scmp.ne.s32.totalorder %s212, %s213
    %p225 = scmp.eq.s32.totalorder %s21, 1
    %p226 = por %p224, %p225
    %p228 = scmp.ne.s32.totalorder %s213, %s227
    %p229 = scmp.eq.s32.totalorder %s21, 0
    %p230 = por %p228, %p229
    %s231 = ssub.s32 %s22, %s34
    %s232 = ssub.s32 %s23, %s30
    %s233 = sor.u32 %s231, %s232
    %p234 = scmp.eq.s32.totalorder %s233, 0
    %s236 = sadd.s32 %s235, 1
    %s237 = scalar_select %p234, %s235, %s236
    %p240 = pneg %p234
    %p241 = scmp.eq.s32.totalorder %s15, 1
    %p242 = por %p240, %p241
    %p243 = scmp.ne.s32.totalorder %s235, %s238
    %p244 = scmp.eq.s32.totalorder %s15, 0
    %p245 = por %p243, %p244
    %p246 = scmp.ne.s32.totalorder %s235, %s238
    %p247 = scmp.eq.s32.totalorder %s20, 1
    %p248 = por %p246, %p247
    %p249 = scmp.ne.s32.totalorder %s238, %s239
    %p250 = scmp.eq.s32.totalorder %s20, 0
    %p251 = por %p249, %p250
    %p252 = scmp.ne.s32.totalorder %s238, %s239
    %p253 = scmp.eq.s32.totalorder %s21, 1
    %p254 = por %p252, %p253
    %p256 = scmp.ne.s32.totalorder %s239, %s255
    %p257 = scmp.eq.s32.totalorder %s21, 0
    %p258 = por %p256, %p257
    %p259 = scmp.le.s32.totalorder 1, %s15
    %p260 = scmp.lt.s32.totalorder %s15, 3
    %p261 = pnand %p259, %p260
    %p262 = pneg %p261
    // Predicated region
    $region9: #{er_estimate_forward.1} parent=5 // pred_check
      _
    $region10: #{er_estimate_forward.1} parent=5 // pred_check_branch
      %264 = sbr.rel (%p261) target = $region12
    $region11: #{er_estimate_forward.1} parent=5 // pred_region
      %s265 = ssub.s32 %s15, 1
      // Predicated region
      $region13: #{er_estimate_forward.1} parent=11 // pred_check
        %p266 = pneg %p76
      $region14: #{er_estimate_forward.1} parent=11 // pred_check_branch
        %268 = sbr.rel (%p266) target = $region16
      $region15: #{er_estimate_forward.1} parent=11 // pred_region
        _
      $region16: #{er_estimate_forward.1} parent=11 // pred_fallthru
        _
      // Predicated region
      $region17: #{er_estimate_forward.1} parent=11 // pred_check
        %p269 = pneg %p97
      $region18: #{er_estimate_forward.1} parent=11 // pred_check_branch
        %271 = sbr.rel (%p269) target = $region20
      $region19: #{er_estimate_forward.1} parent=11 // pred_region
        _
      $region20: #{er_estimate_forward.1} parent=11 // pred_fallthru
        _
      // Predicated region
      $region21: #{er_estimate_forward.1} parent=11 // pred_check
        %p272 = pneg %p118
      $region22: #{er_estimate_forward.1} parent=11 // pred_check_branch
        %274 = sbr.rel (%p272) target = $region24
      $region23: #{er_estimate_forward.1} parent=11 // pred_region
        _
      $region24: #{er_estimate_forward.1} parent=11 // pred_fallthru
        _
      // Predicated region
      $region25: #{er_estimate_forward.1} parent=11 // pred_check
        %p275 = pneg %p139
      $region26: #{er_estimate_forward.1} parent=11 // pred_check_branch
        %277 = sbr.rel (%p275) target = $region28
      $region27: #{er_estimate_forward.1} parent=11 // pred_region
        _
      $region28: #{er_estimate_forward.1} parent=11 // pred_fallthru
        _
      // Predicated region
      $region29: #{er_estimate_forward.1} parent=11 // pred_check
        %p278 = pneg %p160
      $region30: #{er_estimate_forward.1} parent=11 // pred_check_branch
        %280 = sbr.rel (%p278) target = $region32
      $region31: #{er_estimate_forward.1} parent=11 // pred_region
        _
      $region32: #{er_estimate_forward.1} parent=11 // pred_fallthru
        _
      // Predicated region
      $region33: #{er_estimate_forward.1} parent=11 // pred_check
        %p281 = pneg %p181
      $region34: #{er_estimate_forward.1} parent=11 // pred_check_branch
        %283 = sbr.rel (%p281) target = $region36
      $region35: #{er_estimate_forward.1} parent=11 // pred_region
        _
      $region36: #{er_estimate_forward.1} parent=11 // pred_fallthru
        _
      // Predicated region
      $region37: #{er_estimate_forward.1} parent=11 // pred_check
        %p284 = pneg %p202
      $region38: #{er_estimate_forward.1} parent=11 // pred_check_branch
        %286 = sbr.rel (%p284) target = $region40
      $region39: #{er_estimate_forward.1} parent=11 // pred_region
        _
      $region40: #{er_estimate_forward.1} parent=11 // pred_fallthru
        _
      // Predicated region
      $region41: #{er_estimate_forward.1} parent=11 // pred_check
        %p287 = pneg %p223
      $region42: #{er_estimate_forward.1} parent=11 // pred_check_branch
        %289 = sbr.rel (%p287) target = $region44
      $region43: #{er_estimate_forward.1} parent=11 // pred_region
        _
      $region44: #{er_estimate_forward.1} parent=11 // pred_fallthru
        _
    $region12: #{er_estimate_forward.1} parent=5 // pred_fallthru
      _
    %p290 = scmp.lt.s32.totalorder %s15, 2
    // Predicated region
    $region45: #{er_estimate_forward.1} parent=5 // pred_check
      %p291 = pneg %p290
    $region46: #{er_estimate_forward.1} parent=5 // pred_check_branch
      %293 = sbr.rel (%p291) target = $region48
    $region47: #{er_estimate_forward.1} parent=5 // pred_region
      // Predicated region
      $region49: #{er_estimate_forward.1} parent=47 // pred_check
        %p294 = pneg %p49
      $region50: #{er_estimate_forward.1} parent=47 // pred_check_branch
        %296 = sbr.rel (%p294) target = $region52
      $region51: #{er_estimate_forward.1} parent=47 // pred_region
        %s297 = smul.u32 4, %s23
        %p298 = scmp.lt.s32.totalorder %s22, 1
        %s299 = scalar_select %p298, %s22, 1
        %p300 = scmp.lt.s32.totalorder %s297, 3
        %s301 = scalar_select %p300, %s297, 3
        %s302 = smul.addr %s299, 128
        %s303 = sadd.s32 %s301, %s302
        %s304 = smul.addr %s303, 4
        %s305 = scalar_lea.vmem %s0, %s304
        %s306 = smul.u32 4, %s23
      $region52: #{er_estimate_forward.1} parent=47 // pred_fallthru
        _
    $region48: #{er_estimate_forward.1} parent=5 // pred_fallthru
      _
    %p307 = scmp.le.s32.totalorder 1, %s15
    %p308 = scmp.lt.s32.totalorder %s15, 3
    %p309 = pnand %p307, %p308
    %p310 = pneg %p309
    // Predicated region
    $region53: #{er_estimate_forward.1} parent=5 // pred_check
      _
    $region54: #{er_estimate_forward.1} parent=5 // pred_check_branch
      %312 = sbr.rel (%p309) target = $region56
    $region55: #{er_estimate_forward.1} parent=5 // pred_region
      %s313 = ssub.s32 %s15, 1
      %s314 = smul.u32 4, %s25
      %p315 = scmp.lt.s32.totalorder %s24, 1
      %s316 = scalar_select %p315, %s24, 1
      %p317 = scmp.lt.s32.totalorder %s314, 3
      %s318 = scalar_select %p317, %s314, 3
      %s319 = smul.addr %s316, 128
      %s320 = sadd.s32 %s318, %s319
      %s321 = smul.addr %s320, 4
      %s322 = scalar_lea.vmem %s0, %s321
      %p323 = pneg %p55
      %p324 = pneg %p52
      %p325 = pneg %p76
      %p326 = pneg %p73
      %p327 = pneg %p97
      %p328 = pneg %p94
      %p329 = pneg %p118
      %p330 = pneg %p115
      %p331 = pneg %p139
      %p332 = pneg %p136
      %p333 = pneg %p160
      %p334 = pneg %p157
      %p335 = pneg %p181
      %p336 = pneg %p178
      %p337 = pneg %p202
      %p338 = pneg %p199
      %p339 = pneg %p223
      %p340 = pneg %p220
      %p341 = pneg %p251
      %p342 = pneg %p248
      %s343 = smul.u32 4, %s25
      %p344 = scmp.lt.s32.totalorder %s24, 1
      %s345 = scalar_select %p344, %s24, 1
      %p346 = scmp.lt.s32.totalorder %s343, 3
      %s347 = scalar_select %p346, %s343, 3
      %s348 = smul.addr %s345, 4
      %s349 = sadd.s32 %s347, %s348
      %s350 = smul.addr %s349, 8
      %s351 = scalar_lea.vmem %s9, %s350
      %s352 = smul.u32 4, %s25
      %p353 = scmp.lt.s32.totalorder %s24, 1
      %s354 = scalar_select %p353, %s24, 1
      %p355 = scmp.lt.s32.totalorder %s352, 3
      %s356 = scalar_select %p355, %s352, 3
      %s357 = smul.addr %s354, 128
      %s358 = sadd.s32 %s356, %s357
      %s359 = smul.addr %s358, 4
      %s360 = scalar_lea.vmem %s0, %s359
      %s361 = smul.u32 4, %s25
      %s362 = smul.u32 4, %s25
      %p363 = scmp.lt.s32.totalorder %s24, 1
      %s364 = scalar_select %p363, %s24, 1
      %p365 = scmp.lt.s32.totalorder %s362, 3
      %s366 = scalar_select %p365, %s362, 3
      %s367 = smul.addr %s364, 4
      %s368 = sadd.s32 %s366, %s367
      %s369 = smul.addr %s368, 8
      %s370 = scalar_lea.vmem %s9, %s369
      %s371 = smul.u32 4, %s25
      %v373 = vld [vmem:[%s360] sm:$0xff]
      %v374 = vld [vmem:[%s360 + $0x8] sm:$0xff]
      %v375 = vld [vmem:[%s360 + $0x10] sm:$0xff]
      %v376 = vld [vmem:[%s360 + $0x18] sm:$0xff]
      %v377 = vld [vmem:[%s360 + $0x20] sm:$0xff]
      %v378 = vld [vmem:[%s360 + $0x28] sm:$0xff]
      %v379 = vld [vmem:[%s360 + $0x30] sm:$0xff]
      %v380 = vld [vmem:[%s360 + $0x38] sm:$0xff]
      %v381 = vld [vmem:[%s360 + $0x40] sm:$0xff]
      %v382 = vld [vmem:[%s360 + $0x48] sm:$0xff]
      %v383 = vld [vmem:[%s360 + $0x50] sm:$0xff]
      %v384 = vld [vmem:[%s360 + $0x58] sm:$0xff]
      %v385 = vld [vmem:[%s360 + $0x60] sm:$0xff]
      %v386 = vld [vmem:[%s360 + $0x68] sm:$0xff]
      %v387 = vld [vmem:[%s360 + $0x70] sm:$0xff]
      %v388 = vld [vmem:[%s360 + $0x78] sm:$0xff]
      %v389 = vld [vmem:[%s360 + $0x80] sm:$0xff]
      %v390 = vld [vmem:[%s360 + $0x88] sm:$0xff]
      %v391 = vld [vmem:[%s360 + $0x90] sm:$0xff]
      %v392 = vld [vmem:[%s360 + $0x98] sm:$0xff]
      %v393 = vld [vmem:[%s360 + $0xa0] sm:$0xff]
      %v394 = vld [vmem:[%s360 + $0xa8] sm:$0xff]
      %v395 = vld [vmem:[%s360 + $0xb0] sm:$0xff]
      %v396 = vld [vmem:[%s360 + $0xb8] sm:$0xff]
      %v397 = vld [vmem:[%s360 + $0xc0] sm:$0xff]
      %v398 = vld [vmem:[%s360 + $0xc8] sm:$0xff]
      %v399 = vld [vmem:[%s360 + $0xd0] sm:$0xff]
      %v400 = vld [vmem:[%s360 + $0xd8] sm:$0xff]
      %v401 = vld [vmem:[%s360 + $0xe0] sm:$0xff]
      %v402 = vld [vmem:[%s360 + $0xe8] sm:$0xff]
      %v403 = vld [vmem:[%s360 + $0xf0] sm:$0xff]
      %v404 = vld [vmem:[%s360 + $0xf8] sm:$0xff]
      %v405 = vld [vmem:[%s360 + $0x100] sm:$0xff]
      %v406 = vld [vmem:[%s360 + $0x108] sm:$0xff]
      %v407 = vld [vmem:[%s360 + $0x110] sm:$0xff]
      %v408 = vld [vmem:[%s360 + $0x118] sm:$0xff]
      %v409 = vld [vmem:[%s360 + $0x120] sm:$0xff]
      %v410 = vld [vmem:[%s360 + $0x128] sm:$0xff]
      %v411 = vld [vmem:[%s360 + $0x130] sm:$0xff]
      %v412 = vld [vmem:[%s360 + $0x138] sm:$0xff]
      %v413 = vld [vmem:[%s360 + $0x140] sm:$0xff]
      %v414 = vld [vmem:[%s360 + $0x148] sm:$0xff]
      %v415 = vld [vmem:[%s360 + $0x150] sm:$0xff]
      %v416 = vld [vmem:[%s360 + $0x158] sm:$0xff]
      %v417 = vld [vmem:[%s360 + $0x160] sm:$0xff]
      %v418 = vld [vmem:[%s360 + $0x168] sm:$0xff]
      %v419 = vld [vmem:[%s360 + $0x170] sm:$0xff]
      %v420 = vld [vmem:[%s360 + $0x178] sm:$0xff]
      %v421 = vld [vmem:[%s360 + $0x180] sm:$0xff]
      %v422 = vld [vmem:[%s360 + $0x188] sm:$0xff]
      %v423 = vld [vmem:[%s360 + $0x190] sm:$0xff]
      %v424 = vld [vmem:[%s360 + $0x198] sm:$0xff]
      %v425 = vld [vmem:[%s360 + $0x1a0] sm:$0xff]
      %v426 = vld [vmem:[%s360 + $0x1a8] sm:$0xff]
      %v427 = vld [vmem:[%s360 + $0x1b0] sm:$0xff]
      %v428 = vld [vmem:[%s360 + $0x1b8] sm:$0xff]
      %v429 = vld [vmem:[%s360 + $0x1c0] sm:$0xff]
      %v430 = vld [vmem:[%s360 + $0x1c8] sm:$0xff]
      %v431 = vld [vmem:[%s360 + $0x1d0] sm:$0xff]
      %v432 = vld [vmem:[%s360 + $0x1d8] sm:$0xff]
      %v433 = vld [vmem:[%s360 + $0x1e0] sm:$0xff]
      %v434 = vld [vmem:[%s360 + $0x1e8] sm:$0xff]
      %v435 = vld [vmem:[%s360 + $0x1f0] sm:$0xff]
      %v436 = vld [vmem:[%s360 + $0x1f8] sm:$0xff]
      %v437 = vld [vmem:[%s1] sm:$0xff]
      %v438 = vld [vmem:[%s1 + $0x8] sm:$0xff]
      %v439 = vld [vmem:[%s1 + $0x10] sm:$0xff]
      %v440 = vld [vmem:[%s1 + $0x18] sm:$0xff]
      %v441 = vld [vmem:[%s1 + $0x20] sm:$0xff]
      %v442 = vld [vmem:[%s1 + $0x28] sm:$0xff]
      %v443 = vld [vmem:[%s1 + $0x30] sm:$0xff]
      %v444 = vld [vmem:[%s1 + $0x38] sm:$0xff]
      %v445 = vld [vmem:[%s1 + $0x40] sm:$0xff]
      %v446 = vld [vmem:[%s1 + $0x48] sm:$0xff]
      %v447 = vld [vmem:[%s1 + $0x50] sm:$0xff]
      %v448 = vld [vmem:[%s1 + $0x58] sm:$0xff]
      %v449 = vld [vmem:[%s1 + $0x60] sm:$0xff]
      %v450 = vld [vmem:[%s1 + $0x68] sm:$0xff]
      %v451 = vld [vmem:[%s1 + $0x70] sm:$0xff]
      %v452 = vld [vmem:[%s1 + $0x78] sm:$0xff]
      %v453 = vld [vmem:[%s1 + $0x80] sm:$0xff]
      %v454 = vld [vmem:[%s1 + $0x88] sm:$0xff]
      %v455 = vld [vmem:[%s1 + $0x90] sm:$0xff]
      %v456 = vld [vmem:[%s1 + $0x98] sm:$0xff]
      %v457 = vld [vmem:[%s1 + $0xa0] sm:$0xff]
      %v458 = vld [vmem:[%s1 + $0xa8] sm:$0xff]
      %v459 = vld [vmem:[%s1 + $0xb0] sm:$0xff]
      %v460 = vld [vmem:[%s1 + $0xb8] sm:$0xff]
      %v461 = vld [vmem:[%s1 + $0xc0] sm:$0xff]
      %v462 = vld [vmem:[%s1 + $0xc8] sm:$0xff]
      %v463 = vld [vmem:[%s1 + $0xd0] sm:$0xff]
      %v464 = vld [vmem:[%s1 + $0xd8] sm:$0xff]
      %v465 = vld [vmem:[%s1 + $0xe0] sm:$0xff]
      %v466 = vld [vmem:[%s1 + $0xe8] sm:$0xff]
      %v467 = vld [vmem:[%s1 + $0xf0] sm:$0xff]
      %v468 = vld [vmem:[%s1 + $0xf8] sm:$0xff]
      %v469 = vld [vmem:[%s2] sm:$0xff]
      %v470 = vld [vmem:[%s2 + $0x8] sm:$0xff]
      %v471 = vld [vmem:[%s2 + $0x10] sm:$0xff]
      %v472 = vld [vmem:[%s2 + $0x18] sm:$0xff]
      %v473 = vld [vmem:[%s2 + $0x20] sm:$0xff]
      %v474 = vld [vmem:[%s2 + $0x28] sm:$0xff]
      %v475 = vld [vmem:[%s2 + $0x30] sm:$0xff]
      %v476 = vld [vmem:[%s2 + $0x38] sm:$0xff]
      %v477 = vld [vmem:[%s2 + $0x40] sm:$0xff]
      %v478 = vld [vmem:[%s2 + $0x48] sm:$0xff]
      %v479 = vld [vmem:[%s2 + $0x50] sm:$0xff]
      %v480 = vld [vmem:[%s2 + $0x58] sm:$0xff]
      %v481 = vld [vmem:[%s2 + $0x60] sm:$0xff]
      %v482 = vld [vmem:[%s2 + $0x68] sm:$0xff]
      %v483 = vld [vmem:[%s2 + $0x70] sm:$0xff]
      %v484 = vld [vmem:[%s2 + $0x78] sm:$0xff]
      %v485 = vld [vmem:[%s2 + $0x80] sm:$0xff]
      %v486 = vld [vmem:[%s2 + $0x88] sm:$0xff]
      %v487 = vld [vmem:[%s2 + $0x90] sm:$0xff]
      %v488 = vld [vmem:[%s2 + $0x98] sm:$0xff]
      %v489 = vld [vmem:[%s2 + $0xa0] sm:$0xff]
      %v490 = vld [vmem:[%s2 + $0xa8] sm:$0xff]
      %v491 = vld [vmem:[%s2 + $0xb0] sm:$0xff]
      %v492 = vld [vmem:[%s2 + $0xb8] sm:$0xff]
      %v493 = vld [vmem:[%s2 + $0xc0] sm:$0xff]
      %v494 = vld [vmem:[%s2 + $0xc8] sm:$0xff]
      %v495 = vld [vmem:[%s2 + $0xd0] sm:$0xff]
      %v496 = vld [vmem:[%s2 + $0xd8] sm:$0xff]
      %v497 = vld [vmem:[%s2 + $0xe0] sm:$0xff]
      %v498 = vld [vmem:[%s2 + $0xe8] sm:$0xff]
      %v499 = vld [vmem:[%s2 + $0xf0] sm:$0xff]
      %v500 = vld [vmem:[%s2 + $0xf8] sm:$0xff]
      %502 = vset.pattern.permute.xlu0 0
      %503 = vperm.xlu0 %502, %v469
      %v504 = vpop.permute.xlu0 %503
      %507 = vset.pattern.permute.xlu0 0
      %508 = vperm.xlu0 %507, %v470
      %v509 = vpop.permute.xlu0 %508
      %512 = vset.pattern.permute.xlu0 0
      %513 = vperm.xlu0 %512, %v471
      %v514 = vpop.permute.xlu0 %513
      %517 = vset.pattern.permute.xlu0 0
      %518 = vperm.xlu0 %517, %v472
      %v519 = vpop.permute.xlu0 %518
      %522 = vset.pattern.permute.xlu0 0
      %523 = vperm.xlu0 %522, %v473
      %v524 = vpop.permute.xlu0 %523
      %527 = vset.pattern.permute.xlu0 0
      %528 = vperm.xlu0 %527, %v474
      %v529 = vpop.permute.xlu0 %528
      %532 = vset.pattern.permute.xlu0 0
      %533 = vperm.xlu0 %532, %v475
      %v534 = vpop.permute.xlu0 %533
      %537 = vset.pattern.permute.xlu0 0
      %538 = vperm.xlu0 %537, %v476
      %v539 = vpop.permute.xlu0 %538
      %542 = vset.pattern.permute.xlu0 0
      %543 = vperm.xlu0 %542, %v477
      %v544 = vpop.permute.xlu0 %543
      %547 = vset.pattern.permute.xlu0 0
      %548 = vperm.xlu0 %547, %v478
      %v549 = vpop.permute.xlu0 %548
      %552 = vset.pattern.permute.xlu0 0
      %553 = vperm.xlu0 %552, %v479
      %v554 = vpop.permute.xlu0 %553
      %557 = vset.pattern.permute.xlu0 0
      %558 = vperm.xlu0 %557, %v480
      %v559 = vpop.permute.xlu0 %558
      %562 = vset.pattern.permute.xlu0 0
      %563 = vperm.xlu0 %562, %v481
      %v564 = vpop.permute.xlu0 %563
      %567 = vset.pattern.permute.xlu0 0
      %568 = vperm.xlu0 %567, %v482
      %v569 = vpop.permute.xlu0 %568
      %572 = vset.pattern.permute.xlu0 0
      %573 = vperm.xlu0 %572, %v483
      %v574 = vpop.permute.xlu0 %573
      %577 = vset.pattern.permute.xlu0 0
      %578 = vperm.xlu0 %577, %v484
      %v579 = vpop.permute.xlu0 %578
      %582 = vset.pattern.permute.xlu0 0
      %583 = vperm.xlu0 %582, %v485
      %v584 = vpop.permute.xlu0 %583
      %587 = vset.pattern.permute.xlu0 0
      %588 = vperm.xlu0 %587, %v486
      %v589 = vpop.permute.xlu0 %588
      %592 = vset.pattern.permute.xlu0 0
      %593 = vperm.xlu0 %592, %v487
      %v594 = vpop.permute.xlu0 %593
      %597 = vset.pattern.permute.xlu0 0
      %598 = vperm.xlu0 %597, %v488
      %v599 = vpop.permute.xlu0 %598
      %602 = vset.pattern.permute.xlu0 0
      %603 = vperm.xlu0 %602, %v489
      %v604 = vpop.permute.xlu0 %603
      %607 = vset.pattern.permute.xlu0 0
      %608 = vperm.xlu0 %607, %v490
      %v609 = vpop.permute.xlu0 %608
      %612 = vset.pattern.permute.xlu0 0
      %613 = vperm.xlu0 %612, %v491
      %v614 = vpop.permute.xlu0 %613
      %617 = vset.pattern.permute.xlu0 0
      %618 = vperm.xlu0 %617, %v492
      %v619 = vpop.permute.xlu0 %618
      %622 = vset.pattern.permute.xlu0 0
      %623 = vperm.xlu0 %622, %v493
      %v624 = vpop.permute.xlu0 %623
      %627 = vset.pattern.permute.xlu0 0
      %628 = vperm.xlu0 %627, %v494
      %v629 = vpop.permute.xlu0 %628
      %632 = vset.pattern.permute.xlu0 0
      %633 = vperm.xlu0 %632, %v495
      %v634 = vpop.permute.xlu0 %633
      %637 = vset.pattern.permute.xlu0 0
      %638 = vperm.xlu0 %637, %v496
      %v639 = vpop.permute.xlu0 %638
      %642 = vset.pattern.permute.xlu0 0
      %643 = vperm.xlu0 %642, %v497
      %v644 = vpop.permute.xlu0 %643
      %647 = vset.pattern.permute.xlu0 0
      %648 = vperm.xlu0 %647, %v498
      %v649 = vpop.permute.xlu0 %648
      %652 = vset.pattern.permute.xlu0 0
      %653 = vperm.xlu0 %652, %v499
      %v654 = vpop.permute.xlu0 %653
      %657 = vset.pattern.permute.xlu0 0
      %658 = vperm.xlu0 %657, %v500
      %v659 = vpop.permute.xlu0 %658
      %v693 = vunpack.c.l.b16 %v437
      %v694 = vunpack.c.h.b16 %v437
      %v695 = vunpack.c.l.b16 %v438
      %v696 = vunpack.c.h.b16 %v438
      %v697 = vunpack.c.l.b16 %v439
      %v698 = vunpack.c.h.b16 %v439
      %v699 = vunpack.c.l.b16 %v440
      %v700 = vunpack.c.h.b16 %v440
      %v701 = vunpack.c.l.b16 %v441
      %v702 = vunpack.c.h.b16 %v441
      %v703 = vunpack.c.l.b16 %v442
      %v704 = vunpack.c.h.b16 %v442
      %v705 = vunpack.c.l.b16 %v443
      %v706 = vunpack.c.h.b16 %v443
      %v707 = vunpack.c.l.b16 %v444
      %v708 = vunpack.c.h.b16 %v444
      %v709 = vunpack.c.l.b16 %v445
      %v710 = vunpack.c.h.b16 %v445
      %v711 = vunpack.c.l.b16 %v446
      %v712 = vunpack.c.h.b16 %v446
      %v713 = vunpack.c.l.b16 %v447
      %v714 = vunpack.c.h.b16 %v447
      %v715 = vunpack.c.l.b16 %v448
      %v716 = vunpack.c.h.b16 %v448
      %v717 = vunpack.c.l.b16 %v449
      %v718 = vunpack.c.h.b16 %v449
      %v719 = vunpack.c.l.b16 %v450
      %v720 = vunpack.c.h.b16 %v450
      %v721 = vunpack.c.l.b16 %v451
      %v722 = vunpack.c.h.b16 %v451
      %v723 = vunpack.c.l.b16 %v452
      %v724 = vunpack.c.h.b16 %v452
      %v725 = vunpack.c.l.b16 %v453
      %v726 = vunpack.c.h.b16 %v453
      %v727 = vunpack.c.l.b16 %v454
      %v728 = vunpack.c.h.b16 %v454
      %v729 = vunpack.c.l.b16 %v455
      %v730 = vunpack.c.h.b16 %v455
      %v731 = vunpack.c.l.b16 %v456
      %v732 = vunpack.c.h.b16 %v456
      %v733 = vunpack.c.l.b16 %v457
      %v734 = vunpack.c.h.b16 %v457
      %v735 = vunpack.c.l.b16 %v458
      %v736 = vunpack.c.h.b16 %v458
      %v737 = vunpack.c.l.b16 %v459
      %v738 = vunpack.c.h.b16 %v459
      %v739 = vunpack.c.l.b16 %v460
      %v740 = vunpack.c.h.b16 %v460
      %v741 = vunpack.c.l.b16 %v461
      %v742 = vunpack.c.h.b16 %v461
      %v743 = vunpack.c.l.b16 %v462
      %v744 = vunpack.c.h.b16 %v462
      %v745 = vunpack.c.l.b16 %v463
      %v746 = vunpack.c.h.b16 %v463
      %v747 = vunpack.c.l.b16 %v464
      %v748 = vunpack.c.h.b16 %v464
      %v749 = vunpack.c.l.b16 %v465
      %v750 = vunpack.c.h.b16 %v465
      %v751 = vunpack.c.l.b16 %v466
      %v752 = vunpack.c.h.b16 %v466
      %v753 = vunpack.c.l.b16 %v467
      %v754 = vunpack.c.h.b16 %v467
      %v755 = vunpack.c.l.b16 %v468
      %v756 = vunpack.c.h.b16 %v468
      %v757 = vpack.c.b16 %v695, %v693
      %v758 = vpack.c.b16 %v696, %v694
      %v759 = vpack.c.b16 %v699, %v697
      %v760 = vpack.c.b16 %v700, %v698
      %v761 = vpack.c.b16 %v703, %v701
      %v762 = vpack.c.b16 %v704, %v702
      %v763 = vpack.c.b16 %v707, %v705
      %v764 = vpack.c.b16 %v708, %v706
      %v765 = vpack.c.b16 %v711, %v709
      %v766 = vpack.c.b16 %v712, %v710
      %v767 = vpack.c.b16 %v715, %v713
      %v768 = vpack.c.b16 %v716, %v714
      %v769 = vpack.c.b16 %v719, %v717
      %v770 = vpack.c.b16 %v720, %v718
      %v771 = vpack.c.b16 %v723, %v721
      %v772 = vpack.c.b16 %v724, %v722
      %v773 = vpack.c.b16 %v727, %v725
      %v774 = vpack.c.b16 %v728, %v726
      %v775 = vpack.c.b16 %v731, %v729
      %v776 = vpack.c.b16 %v732, %v730
      %v777 = vpack.c.b16 %v735, %v733
      %v778 = vpack.c.b16 %v736, %v734
      %v779 = vpack.c.b16 %v739, %v737
      %v780 = vpack.c.b16 %v740, %v738
      %v781 = vpack.c.b16 %v743, %v741
      %v782 = vpack.c.b16 %v744, %v742
      %v783 = vpack.c.b16 %v747, %v745
      %v784 = vpack.c.b16 %v748, %v746
      %v785 = vpack.c.b16 %v751, %v749
      %v786 = vpack.c.b16 %v752, %v750
      %v787 = vpack.c.b16 %v755, %v753
      %v788 = vpack.c.b16 %v756, %v754
      %v885 = vunpack.c.l.b16 %v373
      %v886 = vunpack.c.h.b16 %v373
      %v887 = vunpack.c.l.b16 %v374
      %v888 = vunpack.c.h.b16 %v374
      %v889 = vunpack.c.l.b16 %v375
      %v890 = vunpack.c.h.b16 %v375
      %v891 = vunpack.c.l.b16 %v376
      %v892 = vunpack.c.h.b16 %v376
      %v893 = vunpack.c.l.b16 %v377
      %v894 = vunpack.c.h.b16 %v377
      %v895 = vunpack.c.l.b16 %v378
      %v896 = vunpack.c.h.b16 %v378
      %v897 = vunpack.c.l.b16 %v379
      %v898 = vunpack.c.h.b16 %v379
      %v899 = vunpack.c.l.b16 %v380
      %v900 = vunpack.c.h.b16 %v380
      %v901 = vunpack.c.l.b16 %v381
      %v902 = vunpack.c.h.b16 %v381
      %v903 = vunpack.c.l.b16 %v382
      %v904 = vunpack.c.h.b16 %v382
      %v905 = vunpack.c.l.b16 %v383
      %v906 = vunpack.c.h.b16 %v383
      %v907 = vunpack.c.l.b16 %v384
      %v908 = vunpack.c.h.b16 %v384
      %v909 = vunpack.c.l.b16 %v385
      %v910 = vunpack.c.h.b16 %v385
      %v911 = vunpack.c.l.b16 %v386
      %v912 = vunpack.c.h.b16 %v386
      %v913 = vunpack.c.l.b16 %v387
      %v914 = vunpack.c.h.b16 %v387
      %v915 = vunpack.c.l.b16 %v388
      %v916 = vunpack.c.h.b16 %v388
      %v917 = vunpack.c.l.b16 %v389
      %v918 = vunpack.c.h.b16 %v389
      %v919 = vunpack.c.l.b16 %v390
      %v920 = vunpack.c.h.b16 %v390
      %v921 = vunpack.c.l.b16 %v391
      %v922 = vunpack.c.h.b16 %v391
      %v923 = vunpack.c.l.b16 %v392
      %v924 = vunpack.c.h.b16 %v392
      %v925 = vunpack.c.l.b16 %v393
      %v926 = vunpack.c.h.b16 %v393
      %v927 = vunpack.c.l.b16 %v394
      %v928 = vunpack.c.h.b16 %v394
      %v929 = vunpack.c.l.b16 %v395
      %v930 = vunpack.c.h.b16 %v395
      %v931 = vunpack.c.l.b16 %v396
      %v932 = vunpack.c.h.b16 %v396
      %v933 = vunpack.c.l.b16 %v397
      %v934 = vunpack.c.h.b16 %v397
      %v935 = vunpack.c.l.b16 %v398
      %v936 = vunpack.c.h.b16 %v398
      %v937 = vunpack.c.l.b16 %v399
      %v938 = vunpack.c.h.b16 %v399
      %v939 = vunpack.c.l.b16 %v400
      %v940 = vunpack.c.h.b16 %v400
      %v941 = vunpack.c.l.b16 %v401
      %v942 = vunpack.c.h.b16 %v401
      %v943 = vunpack.c.l.b16 %v402
      %v944 = vunpack.c.h.b16 %v402
      %v945 = vunpack.c.l.b16 %v403
      %v946 = vunpack.c.h.b16 %v403
      %v947 = vunpack.c.l.b16 %v404
      %v948 = vunpack.c.h.b16 %v404
      %v949 = vunpack.c.l.b16 %v405
      %v950 = vunpack.c.h.b16 %v405
      %v951 = vunpack.c.l.b16 %v406
      %v952 = vunpack.c.h.b16 %v406
      %v953 = vunpack.c.l.b16 %v407
      %v954 = vunpack.c.h.b16 %v407
      %v955 = vunpack.c.l.b16 %v408
      %v956 = vunpack.c.h.b16 %v408
      %v957 = vunpack.c.l.b16 %v409
      %v958 = vunpack.c.h.b16 %v409
      %v959 = vunpack.c.l.b16 %v410
      %v960 = vunpack.c.h.b16 %v410
      %v961 = vunpack.c.l.b16 %v411
      %v962 = vunpack.c.h.b16 %v411
      %v963 = vunpack.c.l.b16 %v412
      %v964 = vunpack.c.h.b16 %v412
      %v965 = vunpack.c.l.b16 %v413
      %v966 = vunpack.c.h.b16 %v413
      %v967 = vunpack.c.l.b16 %v414
      %v968 = vunpack.c.h.b16 %v414
      %v969 = vunpack.c.l.b16 %v415
      %v970 = vunpack.c.h.b16 %v415
      %v971 = vunpack.c.l.b16 %v416
      %v972 = vunpack.c.h.b16 %v416
      %v973 = vunpack.c.l.b16 %v417
      %v974 = vunpack.c.h.b16 %v417
      %v975 = vunpack.c.l.b16 %v418
      %v976 = vunpack.c.h.b16 %v418
      %v977 = vunpack.c.l.b16 %v419
      %v978 = vunpack.c.h.b16 %v419
      %v979 = vunpack.c.l.b16 %v420
      %v980 = vunpack.c.h.b16 %v420
      %v981 = vunpack.c.l.b16 %v421
      %v982 = vunpack.c.h.b16 %v421
      %v983 = vunpack.c.l.b16 %v422
      %v984 = vunpack.c.h.b16 %v422
      %v985 = vunpack.c.l.b16 %v423
      %v986 = vunpack.c.h.b16 %v423
      %v987 = vunpack.c.l.b16 %v424
      %v988 = vunpack.c.h.b16 %v424
      %v989 = vunpack.c.l.b16 %v425
      %v990 = vunpack.c.h.b16 %v425
      %v991 = vunpack.c.l.b16 %v426
      %v992 = vunpack.c.h.b16 %v426
      %v993 = vunpack.c.l.b16 %v427
      %v994 = vunpack.c.h.b16 %v427
      %v995 = vunpack.c.l.b16 %v428
      %v996 = vunpack.c.h.b16 %v428
      %v997 = vunpack.c.l.b16 %v429
      %v998 = vunpack.c.h.b16 %v429
      %v999 = vunpack.c.l.b16 %v430
      %v1000 = vunpack.c.h.b16 %v430
      %v1001 = vunpack.c.l.b16 %v431
      %v1002 = vunpack.c.h.b16 %v431
      %v1003 = vunpack.c.l.b16 %v432
      %v1004 = vunpack.c.h.b16 %v432
      %v1005 = vunpack.c.l.b16 %v433
      %v1006 = vunpack.c.h.b16 %v433
      %v1007 = vunpack.c.l.b16 %v434
      %v1008 = vunpack.c.h.b16 %v434
      %v1009 = vunpack.c.l.b16 %v435
      %v1010 = vunpack.c.h.b16 %v435
      %v1011 = vunpack.c.l.b16 %v436
      %v1012 = vunpack.c.h.b16 %v436
      %v1013 = vpack.c.b16 %v889, %v885
      %v1014 = vpack.c.b16 %v890, %v886
      %v1015 = vpack.c.b16 %v891, %v887
      %v1016 = vpack.c.b16 %v892, %v888
      %v1017 = vpack.c.b16 %v897, %v893
      %v1018 = vpack.c.b16 %v898, %v894
      %v1019 = vpack.c.b16 %v899, %v895
      %v1020 = vpack.c.b16 %v900, %v896
      %v1021 = vpack.c.b16 %v905, %v901
      %v1022 = vpack.c.b16 %v906, %v902
      %v1023 = vpack.c.b16 %v907, %v903
      %v1024 = vpack.c.b16 %v908, %v904
      %v1025 = vpack.c.b16 %v913, %v909
      %v1026 = vpack.c.b16 %v914, %v910
      %v1027 = vpack.c.b16 %v915, %v911
      %v1028 = vpack.c.b16 %v916, %v912
      %v1029 = vpack.c.b16 %v921, %v917
      %v1030 = vpack.c.b16 %v922, %v918
      %v1031 = vpack.c.b16 %v923, %v919
      %v1032 = vpack.c.b16 %v924, %v920
      %v1033 = vpack.c.b16 %v929, %v925
      %v1034 = vpack.c.b16 %v930, %v926
      %v1035 = vpack.c.b16 %v931, %v927
      %v1036 = vpack.c.b16 %v932, %v928
      %v1037 = vpack.c.b16 %v937, %v933
      %v1038 = vpack.c.b16 %v938, %v934
      %v1039 = vpack.c.b16 %v939, %v935
      %v1040 = vpack.c.b16 %v940, %v936
      %v1041 = vpack.c.b16 %v945, %v941
      %v1042 = vpack.c.b16 %v946, %v942
      %v1043 = vpack.c.b16 %v947, %v943
      %v1044 = vpack.c.b16 %v948, %v944
      %v1045 = vpack.c.b16 %v953, %v949
      %v1046 = vpack.c.b16 %v954, %v950
      %v1047 = vpack.c.b16 %v955, %v951
      %v1048 = vpack.c.b16 %v956, %v952
      %v1049 = vpack.c.b16 %v961, %v957
      %v1050 = vpack.c.b16 %v962, %v958
      %v1051 = vpack.c.b16 %v963, %v959
      %v1052 = vpack.c.b16 %v964, %v960
      %v1053 = vpack.c.b16 %v969, %v965
      %v1054 = vpack.c.b16 %v970, %v966
      %v1055 = vpack.c.b16 %v971, %v967
      %v1056 = vpack.c.b16 %v972, %v968
      %v1057 = vpack.c.b16 %v977, %v973
      %v1058 = vpack.c.b16 %v978, %v974
      %v1059 = vpack.c.b16 %v979, %v975
      %v1060 = vpack.c.b16 %v980, %v976
      %v1061 = vpack.c.b16 %v985, %v981
      %v1062 = vpack.c.b16 %v986, %v982
      %v1063 = vpack.c.b16 %v987, %v983
      %v1064 = vpack.c.b16 %v988, %v984
      %v1065 = vpack.c.b16 %v993, %v989
      %v1066 = vpack.c.b16 %v994, %v990
      %v1067 = vpack.c.b16 %v995, %v991
      %v1068 = vpack.c.b16 %v996, %v992
      %v1069 = vpack.c.b16 %v1001, %v997
      %v1070 = vpack.c.b16 %v1002, %v998
      %v1071 = vpack.c.b16 %v1003, %v999
      %v1072 = vpack.c.b16 %v1004, %v1000
      %v1073 = vpack.c.b16 %v1009, %v1005
      %v1074 = vpack.c.b16 %v1010, %v1006
      %v1075 = vpack.c.b16 %v1011, %v1007
      %v1076 = vpack.c.b16 %v1012, %v1008
      %1141 = vmatprep.subr.bf16.mxu0 %v1014
      %1142 = vmatpush1.bf16.msra.mxu0 %v1013
      %1143 = vmatprep.subr.bf16.mxu0 %v1018
      %1144 = vmatpush1.bf16.msra.mxu0 %v1017
      %1145 = vmatprep.subr.bf16.mxu0 %v1022
      %1146 = vmatpush1.bf16.msra.mxu0 %v1021
      %1147 = vmatprep.subr.bf16.mxu0 %v1026
      %1148 = vmatpush1.bf16.msra.mxu0 %v1025
      %1149 = vmatprep.subr.bf16.mxu0 %v1030
      %1150 = vmatpush1.bf16.msra.mxu0 %v1029
      %1151 = vmatprep.subr.bf16.mxu0 %v1034
      %1152 = vmatpush1.bf16.msra.mxu0 %v1033
      %1153 = vmatprep.subr.bf16.mxu0 %v1038
      %1154 = vmatpush1.bf16.msra.mxu0 %v1037
      %1155 = vmatprep.subr.bf16.mxu0 %v1042
      %1156 = vmatpush1.bf16.msra.mxu0 %v1041
      %1157 = vmatprep.subr.bf16.mxu0 %v1046
      %1158 = vmatpush1.bf16.msra.mxu0 %v1045
      %1159 = vmatprep.subr.bf16.mxu0 %v1050
      %1160 = vmatpush1.bf16.msra.mxu0 %v1049
      %1161 = vmatprep.subr.bf16.mxu0 %v1054
      %1162 = vmatpush1.bf16.msra.mxu0 %v1053
      %1163 = vmatprep.subr.bf16.mxu0 %v1058
      %1164 = vmatpush1.bf16.msra.mxu0 %v1057
      %1165 = vmatprep.subr.bf16.mxu0 %v1062
      %1166 = vmatpush1.bf16.msra.mxu0 %v1061
      %1167 = vmatprep.subr.bf16.mxu0 %v1066
      %1168 = vmatpush1.bf16.msra.mxu0 %v1065
      %1169 = vmatprep.subr.bf16.mxu0 %v1070
      %1170 = vmatpush1.bf16.msra.mxu0 %v1069
      %1171 = vmatprep.subr.bf16.mxu0 %v1074
      %1172 = vmatpush1.bf16.msra.mxu0 %v1073
      %1173 = vmatprep.mubr.bf16.mxu0 %v758
      %1174 = vmatmul.mubr.bf16.gmra.mrb[0].mxu0 %v757
      %v1175 = vpop.f32.mrb[0].mxu0
      %v1176 = vadd.f32 %v504, %v1175
      %v1177 = vpop.f32.mrb[0].mxu0
      %v1178 = vadd.f32 %v504, %v1177
      %v1179 = vpop.f32.mrb[0].mxu0
      %v1180 = vadd.f32 %v509, %v1179
      %v1181 = vpop.f32.mrb[0].mxu0
      %v1182 = vadd.f32 %v509, %v1181
      %1183 = vmatprep.mubr.bf16.mxu0 %v760
      %1184 = vmatmul.mubr.bf16.gmra.mrb[0].mxu0 %v759
      %v1185 = vpop.f32.mrb[0].mxu0
      %v1186 = vadd.f32 %v514, %v1185
      %v1187 = vpop.f32.mrb[0].mxu0
      %v1188 = vadd.f32 %v514, %v1187
      %v1189 = vpop.f32.mrb[0].mxu0
      %v1190 = vadd.f32 %v519, %v1189
      %v1191 = vpop.f32.mrb[0].mxu0
      %v1192 = vadd.f32 %v519, %v1191
      %1193 = vmatprep.mubr.bf16.mxu0 %v762
      %1194 = vmatmul.mubr.bf16.gmra.mrb[0].mxu0 %v761
      %v1195 = vpop.f32.mrb[0].mxu0
      %v1196 = vadd.f32 %v524, %v1195
      %v1197 = vpop.f32.mrb[0].mxu0
      %v1198 = vadd.f32 %v524, %v1197
      %v1199 = vpop.f32.mrb[0].mxu0
      %v1200 = vadd.f32 %v529, %v1199
      %v1201 = vpop.f32.mrb[0].mxu0
      %v1202 = vadd.f32 %v529, %v1201
      %1203 = vmatprep.mubr.bf16.mxu0 %v764
      %1204 = vmatmul.mubr.bf16.gmra.mrb[0].mxu0 %v763
      %v1205 = vpop.f32.mrb[0].mxu0
      %v1206 = vadd.f32 %v534, %v1205
      %v1207 = vpop.f32.mrb[0].mxu0
      %v1208 = vadd.f32 %v534, %v1207
      %v1209 = vpop.f32.mrb[0].mxu0
      %v1210 = vadd.f32 %v539, %v1209
      %v1211 = vpop.f32.mrb[0].mxu0
      %v1212 = vadd.f32 %v539, %v1211
      %1213 = vmatprep.mubr.bf16.mxu0 %v766
      %1214 = vmatmul.mubr.bf16.gmra.mrb[0].mxu0 %v765
      %v1215 = vpop.f32.mrb[0].mxu0
      %v1216 = vadd.f32 %v544, %v1215
      %v1217 = vpop.f32.mrb[0].mxu0
      %v1218 = vadd.f32 %v544, %v1217
      %v1219 = vpop.f32.mrb[0].mxu0
      %v1220 = vadd.f32 %v549, %v1219
      %v1221 = vpop.f32.mrb[0].mxu0
      %v1222 = vadd.f32 %v549, %v1221
      %1223 = vmatprep.mubr.bf16.mxu0 %v768
      %1224 = vmatmul.mubr.bf16.gmra.mrb[0].mxu0 %v767
      %v1225 = vpop.f32.mrb[0].mxu0
      %v1226 = vadd.f32 %v554, %v1225
      %v1227 = vpop.f32.mrb[0].mxu0
      %v1228 = vadd.f32 %v554, %v1227
      %v1229 = vpop.f32.mrb[0].mxu0
      %v1230 = vadd.f32 %v559, %v1229
      %v1231 = vpop.f32.mrb[0].mxu0
      %v1232 = vadd.f32 %v559, %v1231
      %1233 = vmatprep.mubr.bf16.mxu0 %v770
      %1234 = vmatmul.mubr.bf16.gmra.mrb[0].mxu0 %v769
      %v1235 = vpop.f32.mrb[0].mxu0
      %v1236 = vadd.f32 %v564, %v1235
      %v1237 = vpop.f32.mrb[0].mxu0
      %v1238 = vadd.f32 %v564, %v1237
      %v1239 = vpop.f32.mrb[0].mxu0
      %v1240 = vadd.f32 %v569, %v1239
      %v1241 = vpop.f32.mrb[0].mxu0
      %v1242 = vadd.f32 %v569, %v1241
      %1243 = vmatprep.mubr.bf16.mxu0 %v772
      %1244 = vmatmul.mubr.bf16.gmra.mrb[0].mxu0 %v771
      %v1245 = vpop.f32.mrb[0].mxu0
      %v1246 = vadd.f32 %v574, %v1245
      %v1247 = vpop.f32.mrb[0].mxu0
      %v1248 = vadd.f32 %v574, %v1247
      %v1249 = vpop.f32.mrb[0].mxu0
      %v1250 = vadd.f32 %v579, %v1249
      %v1251 = vpop.f32.mrb[0].mxu0
      %v1252 = vadd.f32 %v579, %v1251
      %1253 = vmatprep.mubr.bf16.mxu0 %v774
      %1254 = vmatmul.mubr.bf16.gmra.mrb[0].mxu0 %v773
      %v1255 = vpop.f32.mrb[0].mxu0
      %v1256 = vadd.f32 %v584, %v1255
      %v1257 = vpop.f32.mrb[0].mxu0
      %v1258 = vadd.f32 %v584, %v1257
      %v1259 = vpop.f32.mrb[0].mxu0
      %v1260 = vadd.f32 %v589, %v1259
      %v1261 = vpop.f32.mrb[0].mxu0
      %v1262 = vadd.f32 %v589, %v1261
      %1263 = vmatprep.mubr.bf16.mxu0 %v776
      %1264 = vmatmul.mubr.bf16.gmra.mrb[0].mxu0 %v775
      %v1265 = vpop.f32.mrb[0].mxu0
      %v1266 = vadd.f32 %v594, %v1265
      %v1267 = vpop.f32.mrb[0].mxu0
      %v1268 = vadd.f32 %v594, %v1267
      %v1269 = vpop.f32.mrb[0].mxu0
      %v1270 = vadd.f32 %v599, %v1269
      %v1271 = vpop.f32.mrb[0].mxu0
      %v1272 = vadd.f32 %v599, %v1271
      %1273 = vmatprep.mubr.bf16.mxu0 %v778
      %1274 = vmatmul.mubr.bf16.gmra.mrb[0].mxu0 %v777
      %v1275 = vpop.f32.mrb[0].mxu0
      %v1276 = vadd.f32 %v604, %v1275
      %v1277 = vpop.f32.mrb[0].mxu0
      %v1278 = vadd.f32 %v604, %v1277
      %v1279 = vpop.f32.mrb[0].mxu0
      %v1280 = vadd.f32 %v609, %v1279
      %v1281 = vpop.f32.mrb[0].mxu0
      %v1282 = vadd.f32 %v609, %v1281
      %1283 = vmatprep.mubr.bf16.mxu0 %v780
      %1284 = vmatmul.mubr.bf16.gmra.mrb[0].mxu0 %v779
      %v1285 = vpop.f32.mrb[0].mxu0
      %v1286 = vadd.f32 %v614, %v1285
      %v1287 = vpop.f32.mrb[0].mxu0
      %v1288 = vadd.f32 %v614, %v1287
      %v1289 = vpop.f32.mrb[0].mxu0
      %v1290 = vadd.f32 %v619, %v1289
      %v1291 = vpop.f32.mrb[0].mxu0
      %v1292 = vadd.f32 %v619, %v1291
      %1293 = vmatprep.mubr.bf16.mxu0 %v782
      %1294 = vmatmul.mubr.bf16.gmra.mrb[0].mxu0 %v781
      %v1295 = vpop.f32.mrb[0].mxu0
      %v1296 = vadd.f32 %v624, %v1295
      %v1297 = vpop.f32.mrb[0].mxu0
      %v1298 = vadd.f32 %v624, %v1297
      %v1299 = vpop.f32.mrb[0].mxu0
      %v1300 = vadd.f32 %v629, %v1299
      %v1301 = vpop.f32.mrb[0].mxu0
      %v1302 = vadd.f32 %v629, %v1301
      %1303 = vmatprep.mubr.bf16.mxu0 %v784
      %1304 = vmatmul.mubr.bf16.gmra.mrb[0].mxu0 %v783
      %v1305 = vpop.f32.mrb[0].mxu0
      %v1306 = vadd.f32 %v634, %v1305
      %v1307 = vpop.f32.mrb[0].mxu0
      %v1308 = vadd.f32 %v634, %v1307
      %v1309 = vpop.f32.mrb[0].mxu0
      %v1310 = vadd.f32 %v639, %v1309
      %v1311 = vpop.f32.mrb[0].mxu0
      %v1312 = vadd.f32 %v639, %v1311
      %1313 = vmatprep.mubr.bf16.mxu0 %v786
      %1314 = vmatmul.mubr.bf16.gmra.mrb[0].mxu0 %v785
      %v1315 = vpop.f32.mrb[0].mxu0
      %v1316 = vadd.f32 %v644, %v1315
      %v1317 = vpop.f32.mrb[0].mxu0
      %v1318 = vadd.f32 %v644, %v1317
      %v1319 = vpop.f32.mrb[0].mxu0
      %v1320 = vadd.f32 %v649, %v1319
      %v1321 = vpop.f32.mrb[0].mxu0
      %v1322 = vadd.f32 %v649, %v1321
      %1323 = vmatprep.mubr.bf16.mxu0 %v788
      %1324 = vmatmul.mubr.bf16.gmra.mrb[0].mxu0 %v787
      %v1325 = vpop.f32.mrb[0].mxu0
      %v1326 = vadd.f32 %v654, %v1325
      %v1327 = vpop.f32.mrb[0].mxu0
      %v1328 = vadd.f32 %v654, %v1327
      %v1329 = vpop.f32.mrb[0].mxu0
      %v1330 = vadd.f32 %v659, %v1329
      %v1331 = vpop.f32.mrb[0].mxu0
      %v1332 = vadd.f32 %v659, %v1331
      %1333 = vdwg.mxu0
      %1334 = vmatprep.subr.bf16.mxu0 %v1016
      %1335 = vmatpush1.bf16.msra.mxu0 %v1015
      %1336 = vmatprep.subr.bf16.mxu0 %v1020
      %1337 = vmatpush1.bf16.msra.mxu0 %v1019
      %1338 = vmatprep.subr.bf16.mxu0 %v1024
      %1339 = vmatpush1.bf16.msra.mxu0 %v1023
      %1340 = vmatprep.subr.bf16.mxu0 %v1028
      %1341 = vmatpush1.bf16.msra.mxu0 %v1027
      %1342 = vmatprep.subr.bf16.mxu0 %v1032
      %1343 = vmatpush1.bf16.msra.mxu0 %v1031
      %1344 = vmatprep.subr.bf16.mxu0 %v1036
      %1345 = vmatpush1.bf16.msra.mxu0 %v1035
      %1346 = vmatprep.subr.bf16.mxu0 %v1040
      %1347 = vmatpush1.bf16.msra.mxu0 %v1039
      %1348 = vmatprep.subr.bf16.mxu0 %v1044
      %1349 = vmatpush1.bf16.msra.mxu0 %v1043
      %1350 = vmatprep.subr.bf16.mxu0 %v1048
      %1351 = vmatpush1.bf16.msra.mxu0 %v1047
      %1352 = vmatprep.subr.bf16.mxu0 %v1052
      %1353 = vmatpush1.bf16.msra.mxu0 %v1051
      %1354 = vmatprep.subr.bf16.mxu0 %v1056
      %1355 = vmatpush1.bf16.msra.mxu0 %v1055
      %1356 = vmatprep.subr.bf16.mxu0 %v1060
      %1357 = vmatpush1.bf16.msra.mxu0 %v1059
      %1358 = vmatprep.subr.bf16.mxu0 %v1064
      %1359 = vmatpush1.bf16.msra.mxu0 %v1063
      %1360 = vmatprep.subr.bf16.mxu0 %v1068
      %1361 = vmatpush1.bf16.msra.mxu0 %v1067
      %1362 = vmatprep.subr.bf16.mxu0 %v1072
      %1363 = vmatpush1.bf16.msra.mxu0 %v1071
      %1364 = vmatprep.subr.bf16.mxu0 %v1076
      %1365 = vmatpush1.bf16.msra.mxu0 %v1075
      %1366 = vmatprep.mubr.bf16.mxu0 %v758
      %1367 = vmatmul.mubr.bf16.gmra.mrb[0].mxu0 %v757
      %v1368 = vpop.f32.mrb[0].mxu0
      %v1369 = vadd.f32 %v504, %v1368
      %v1370 = vpop.f32.mrb[0].mxu0
      %v1371 = vadd.f32 %v504, %v1370
      %v1372 = vpop.f32.mrb[0].mxu0
      %v1373 = vadd.f32 %v509, %v1372
      %v1374 = vpop.f32.mrb[0].mxu0
      %v1375 = vadd.f32 %v509, %v1374
      %1376 = vmatprep.mubr.bf16.mxu0 %v760
      %1377 = vmatmul.mubr.bf16.gmra.mrb[0].mxu0 %v759
      %v1378 = vpop.f32.mrb[0].mxu0
      %v1379 = vadd.f32 %v514, %v1378
      %v1380 = vpop.f32.mrb[0].mxu0
      %v1381 = vadd.f32 %v514, %v1380
      %v1382 = vpop.f32.mrb[0].mxu0
      %v1383 = vadd.f32 %v519, %v1382
      %v1384 = vpop.f32.mrb[0].mxu0
      %v1385 = vadd.f32 %v519, %v1384
      %1386 = vmatprep.mubr.bf16.mxu0 %v762
      %1387 = vmatmul.mubr.bf16.gmra.mrb[0].mxu0 %v761
      %v1388 = vpop.f32.mrb[0].mxu0
      %v1389 = vadd.f32 %v524, %v1388
      %v1390 = vpop.f32.mrb[0].mxu0
      %v1391 = vadd.f32 %v524, %v1390
      %v1392 = vpop.f32.mrb[0].mxu0
      %v1393 = vadd.f32 %v529, %v1392
      %v1394 = vpop.f32.mrb[0].mxu0
      %v1395 = vadd.f32 %v529, %v1394
      %1396 = vmatprep.mubr.bf16.mxu0 %v764
      %1397 = vmatmul.mubr.bf16.gmra.mrb[0].mxu0 %v763
      %v1398 = vpop.f32.mrb[0].mxu0
      %v1399 = vadd.f32 %v534, %v1398
      %v1400 = vpop.f32.mrb[0].mxu0
      %v1401 = vadd.f32 %v534, %v1400
      %v1402 = vpop.f32.mrb[0].mxu0
      %v1403 = vadd.f32 %v539, %v1402
      %v1404 = vpop.f32.mrb[0].mxu0
      %v1405 = vadd.f32 %v539, %v1404
      %1406 = vmatprep.mubr.bf16.mxu0 %v766
      %1407 = vmatmul.mubr.bf16.gmra.mrb[0].mxu0 %v765
      %v1408 = vpop.f32.mrb[0].mxu0
      %v1409 = vadd.f32 %v544, %v1408
      %v1410 = vpop.f32.mrb[0].mxu0
      %v1411 = vadd.f32 %v544, %v1410
      %v1412 = vpop.f32.mrb[0].mxu0
      %v1413 = vadd.f32 %v549, %v1412
      %v1414 = vpop.f32.mrb[0].mxu0
      %v1415 = vadd.f32 %v549, %v1414
      %1416 = vmatprep.mubr.bf16.mxu0 %v768
      %1417 = vmatmul.mubr.bf16.gmra.mrb[0].mxu0 %v767
      %v1418 = vpop.f32.mrb[0].mxu0
      %v1419 = vadd.f32 %v554, %v1418
      %v1420 = vpop.f32.mrb[0].mxu0
      %v1421 = vadd.f32 %v554, %v1420
      %v1422 = vpop.f32.mrb[0].mxu0
      %v1423 = vadd.f32 %v559, %v1422
      %v1424 = vpop.f32.mrb[0].mxu0
      %v1425 = vadd.f32 %v559, %v1424
      %1426 = vmatprep.mubr.bf16.mxu0 %v770
      %1427 = vmatmul.mubr.bf16.gmra.mrb[0].mxu0 %v769
      %v1428 = vpop.f32.mrb[0].mxu0
      %v1429 = vadd.f32 %v564, %v1428
      %v1430 = vpop.f32.mrb[0].mxu0
      %v1431 = vadd.f32 %v564, %v1430
      %v1432 = vpop.f32.mrb[0].mxu0
      %v1433 = vadd.f32 %v569, %v1432
      %v1434 = vpop.f32.mrb[0].mxu0
      %v1435 = vadd.f32 %v569, %v1434
      %1436 = vmatprep.mubr.bf16.mxu0 %v772
      %1437 = vmatmul.mubr.bf16.gmra.mrb[0].mxu0 %v771
      %v1438 = vpop.f32.mrb[0].mxu0
      %v1439 = vadd.f32 %v574, %v1438
      %v1440 = vpop.f32.mrb[0].mxu0
      %v1441 = vadd.f32 %v574, %v1440
      %v1442 = vpop.f32.mrb[0].mxu0
      %v1443 = vadd.f32 %v579, %v1442
      %v1444 = vpop.f32.mrb[0].mxu0
      %v1445 = vadd.f32 %v579, %v1444
      %1446 = vmatprep.mubr.bf16.mxu0 %v774
      %1447 = vmatmul.mubr.bf16.gmra.mrb[0].mxu0 %v773
      %v1448 = vpop.f32.mrb[0].mxu0
      %v1449 = vadd.f32 %v584, %v1448
      %v1450 = vpop.f32.mrb[0].mxu0
      %v1451 = vadd.f32 %v584, %v1450
      %v1452 = vpop.f32.mrb[0].mxu0
      %v1453 = vadd.f32 %v589, %v1452
      %v1454 = vpop.f32.mrb[0].mxu0
      %v1455 = vadd.f32 %v589, %v1454
      %1456 = vmatprep.mubr.bf16.mxu0 %v776
      %1457 = vmatmul.mubr.bf16.gmra.mrb[0].mxu0 %v775
      %v1458 = vpop.f32.mrb[0].mxu0
      %v1459 = vadd.f32 %v594, %v1458
      %v1460 = vpop.f32.mrb[0].mxu0
      %v1461 = vadd.f32 %v594, %v1460
      %v1462 = vpop.f32.mrb[0].mxu0
      %v1463 = vadd.f32 %v599, %v1462
      %v1464 = vpop.f32.mrb[0].mxu0
      %v1465 = vadd.f32 %v599, %v1464
      %1466 = vmatprep.mubr.bf16.mxu0 %v778
      %1467 = vmatmul.mubr.bf16.gmra.mrb[0].mxu0 %v777
      %v1468 = vpop.f32.mrb[0].mxu0
      %v1469 = vadd.f32 %v604, %v1468
      %v1470 = vpop.f32.mrb[0].mxu0
      %v1471 = vadd.f32 %v604, %v1470
      %v1472 = vpop.f32.mrb[0].mxu0
      %v1473 = vadd.f32 %v609, %v1472
      %v1474 = vpop.f32.mrb[0].mxu0
      %v1475 = vadd.f32 %v609, %v1474
      %1476 = vmatprep.mubr.bf16.mxu0 %v780
      %1477 = vmatmul.mubr.bf16.gmra.mrb[0].mxu0 %v779
      %v1478 = vpop.f32.mrb[0].mxu0
      %v1479 = vadd.f32 %v614, %v1478
      %v1480 = vpop.f32.mrb[0].mxu0
      %v1481 = vadd.f32 %v614, %v1480
      %v1482 = vpop.f32.mrb[0].mxu0
      %v1483 = vadd.f32 %v619, %v1482
      %v1484 = vpop.f32.mrb[0].mxu0
      %v1485 = vadd.f32 %v619, %v1484
      %1486 = vmatprep.mubr.bf16.mxu0 %v782
      %1487 = vmatmul.mubr.bf16.gmra.mrb[0].mxu0 %v781
      %v1488 = vpop.f32.mrb[0].mxu0
      %v1489 = vadd.f32 %v624, %v1488
      %v1490 = vpop.f32.mrb[0].mxu0
      %v1491 = vadd.f32 %v624, %v1490
      %v1492 = vpop.f32.mrb[0].mxu0
      %v1493 = vadd.f32 %v629, %v1492
      %v1494 = vpop.f32.mrb[0].mxu0
      %v1495 = vadd.f32 %v629, %v1494
      %1496 = vmatprep.mubr.bf16.mxu0 %v784
      %1497 = vmatmul.mubr.bf16.gmra.mrb[0].mxu0 %v783
      %v1498 = vpop.f32.mrb[0].mxu0
      %v1499 = vadd.f32 %v634, %v1498
      %v1500 = vpop.f32.mrb[0].mxu0
      %v1501 = vadd.f32 %v634, %v1500
      %v1502 = vpop.f32.mrb[0].mxu0
      %v1503 = vadd.f32 %v639, %v1502
      %v1504 = vpop.f32.mrb[0].mxu0
      %v1505 = vadd.f32 %v639, %v1504
      %1506 = vmatprep.mubr.bf16.mxu0 %v786
      %1507 = vmatmul.mubr.bf16.gmra.mrb[0].mxu0 %v785
      %v1508 = vpop.f32.mrb[0].mxu0
      %v1509 = vadd.f32 %v644, %v1508
      %v1510 = vpop.f32.mrb[0].mxu0
      %v1511 = vadd.f32 %v644, %v1510
      %v1512 = vpop.f32.mrb[0].mxu0
      %v1513 = vadd.f32 %v649, %v1512
      %v1514 = vpop.f32.mrb[0].mxu0
      %v1515 = vadd.f32 %v649, %v1514
      %1516 = vmatprep.mubr.bf16.mxu0 %v788
      %1517 = vmatmul.mubr.bf16.gmra.mrb[0].mxu0 %v787
      %v1518 = vpop.f32.mrb[0].mxu0
      %v1519 = vadd.f32 %v654, %v1518
      %v1520 = vpop.f32.mrb[0].mxu0
      %v1521 = vadd.f32 %v654, %v1520
      %v1522 = vpop.f32.mrb[0].mxu0
      %v1523 = vadd.f32 %v659, %v1522
      %v1524 = vpop.f32.mrb[0].mxu0
      %v1525 = vadd.f32 %v659, %v1524
      %1526 = vdwg.mxu0
      %v1527 = vmax.f32 %v1176, 0.0
      %v1528 = vmax.f32 %v1178, 0.0
      %v1529 = vmax.f32 %v1369, 0.0
      %v1530 = vmax.f32 %v1371, 0.0
      %v1531 = vmax.f32 %v1180, 0.0
      %v1532 = vmax.f32 %v1182, 0.0
      %v1533 = vmax.f32 %v1373, 0.0
      %v1534 = vmax.f32 %v1375, 0.0
      %v1535 = vmax.f32 %v1186, 0.0
      %v1536 = vmax.f32 %v1188, 0.0
      %v1537 = vmax.f32 %v1379, 0.0
      %v1538 = vmax.f32 %v1381, 0.0
      %v1539 = vmax.f32 %v1190, 0.0
      %v1540 = vmax.f32 %v1192, 0.0
      %v1541 = vmax.f32 %v1383, 0.0
      %v1542 = vmax.f32 %v1385, 0.0
      %v1543 = vmax.f32 %v1196, 0.0
      %v1544 = vmax.f32 %v1198, 0.0
      %v1545 = vmax.f32 %v1389, 0.0
      %v1546 = vmax.f32 %v1391, 0.0
      %v1547 = vmax.f32 %v1200, 0.0
      %v1548 = vmax.f32 %v1202, 0.0
      %v1549 = vmax.f32 %v1393, 0.0
      %v1550 = vmax.f32 %v1395, 0.0
      %v1551 = vmax.f32 %v1206, 0.0
      %v1552 = vmax.f32 %v1208, 0.0
      %v1553 = vmax.f32 %v1399, 0.0
      %v1554 = vmax.f32 %v1401, 0.0
      %v1555 = vmax.f32 %v1210, 0.0
      %v1556 = vmax.f32 %v1212, 0.0
      %v1557 = vmax.f32 %v1403, 0.0
      %v1558 = vmax.f32 %v1405, 0.0
      %v1559 = vmax.f32 %v1216, 0.0
      %v1560 = vmax.f32 %v1218, 0.0
      %v1561 = vmax.f32 %v1409, 0.0
      %v1562 = vmax.f32 %v1411, 0.0
      %v1563 = vmax.f32 %v1220, 0.0
      %v1564 = vmax.f32 %v1222, 0.0
      %v1565 = vmax.f32 %v1413, 0.0
      %v1566 = vmax.f32 %v1415, 0.0
      %v1567 = vmax.f32 %v1226, 0.0
      %v1568 = vmax.f32 %v1228, 0.0
      %v1569 = vmax.f32 %v1419, 0.0
      %v1570 = vmax.f32 %v1421, 0.0
      %v1571 = vmax.f32 %v1230, 0.0
      %v1572 = vmax.f32 %v1232, 0.0
      %v1573 = vmax.f32 %v1423, 0.0
      %v1574 = vmax.f32 %v1425, 0.0
      %v1575 = vmax.f32 %v1236, 0.0
      %v1576 = vmax.f32 %v1238, 0.0
      %v1577 = vmax.f32 %v1429, 0.0
      %v1578 = vmax.f32 %v1431, 0.0
      %v1579 = vmax.f32 %v1240, 0.0
      %v1580 = vmax.f32 %v1242, 0.0
      %v1581 = vmax.f32 %v1433, 0.0
      %v1582 = vmax.f32 %v1435, 0.0
      %v1583 = vmax.f32 %v1246, 0.0
      %v1584 = vmax.f32 %v1248, 0.0
      %v1585 = vmax.f32 %v1439, 0.0
      %v1586 = vmax.f32 %v1441, 0.0
      %v1587 = vmax.f32 %v1250, 0.0
      %v1588 = vmax.f32 %v1252, 0.0
      %v1589 = vmax.f32 %v1443, 0.0
      %v1590 = vmax.f32 %v1445, 0.0
      %v1591 = vmax.f32 %v1256, 0.0
      %v1592 = vmax.f32 %v1258, 0.0
      %v1593 = vmax.f32 %v1449, 0.0
      %v1594 = vmax.f32 %v1451, 0.0
      %v1595 = vmax.f32 %v1260, 0.0
      %v1596 = vmax.f32 %v1262, 0.0
      %v1597 = vmax.f32 %v1453, 0.0
      %v1598 = vmax.f32 %v1455, 0.0
      %v1599 = vmax.f32 %v1266, 0.0
      %v1600 = vmax.f32 %v1268, 0.0
      %v1601 = vmax.f32 %v1459, 0.0
      %v1602 = vmax.f32 %v1461, 0.0
      %v1603 = vmax.f32 %v1270, 0.0
      %v1604 = vmax.f32 %v1272, 0.0
      %v1605 = vmax.f32 %v1463, 0.0
      %v1606 = vmax.f32 %v1465, 0.0
      %v1607 = vmax.f32 %v1276, 0.0
      %v1608 = vmax.f32 %v1278, 0.0
      %v1609 = vmax.f32 %v1469, 0.0
      %v1610 = vmax.f32 %v1471, 0.0
      %v1611 = vmax.f32 %v1280, 0.0
      %v1612 = vmax.f32 %v1282, 0.0
      %v1613 = vmax.f32 %v1473, 0.0
      %v1614 = vmax.f32 %v1475, 0.0
      %v1615 = vmax.f32 %v1286, 0.0
      %v1616 = vmax.f32 %v1288, 0.0
      %v1617 = vmax.f32 %v1479, 0.0
      %v1618 = vmax.f32 %v1481, 0.0
      %v1619 = vmax.f32 %v1290, 0.0
      %v1620 = vmax.f32 %v1292, 0.0
      %v1621 = vmax.f32 %v1483, 0.0
      %v1622 = vmax.f32 %v1485, 0.0
      %v1623 = vmax.f32 %v1296, 0.0
      %v1624 = vmax.f32 %v1298, 0.0
      %v1625 = vmax.f32 %v1489, 0.0
      %v1626 = vmax.f32 %v1491, 0.0
      %v1627 = vmax.f32 %v1300, 0.0
      %v1628 = vmax.f32 %v1302, 0.0
      %v1629 = vmax.f32 %v1493, 0.0
      %v1630 = vmax.f32 %v1495, 0.0
      %v1631 = vmax.f32 %v1306, 0.0
      %v1632 = vmax.f32 %v1308, 0.0
      %v1633 = vmax.f32 %v1499, 0.0
      %v1634 = vmax.f32 %v1501, 0.0
      %v1635 = vmax.f32 %v1310, 0.0
      %v1636 = vmax.f32 %v1312, 0.0
      %v1637 = vmax.f32 %v1503, 0.0
      %v1638 = vmax.f32 %v1505, 0.0
      %v1639 = vmax.f32 %v1316, 0.0
      %v1640 = vmax.f32 %v1318, 0.0
      %v1641 = vmax.f32 %v1509, 0.0
      %v1642 = vmax.f32 %v1511, 0.0
      %v1643 = vmax.f32 %v1320, 0.0
      %v1644 = vmax.f32 %v1322, 0.0
      %v1645 = vmax.f32 %v1513, 0.0
      %v1646 = vmax.f32 %v1515, 0.0
      %v1647 = vmax.f32 %v1326, 0.0
      %v1648 = vmax.f32 %v1328, 0.0
      %v1649 = vmax.f32 %v1519, 0.0
      %v1650 = vmax.f32 %v1521, 0.0
      %v1651 = vmax.f32 %v1330, 0.0
      %v1652 = vmax.f32 %v1332, 0.0
      %v1653 = vmax.f32 %v1523, 0.0
      %v1654 = vmax.f32 %v1525, 0.0
      %v1655 = vpack.c.bf16 %v1531, %v1527
      %v1656 = vpack.c.bf16 %v1532, %v1528
      %v1657 = vpack.c.bf16 %v1533, %v1529
      %v1658 = vpack.c.bf16 %v1534, %v1530
      %v1659 = vpack.c.bf16 %v1539, %v1535
      %v1660 = vpack.c.bf16 %v1540, %v1536
      %v1661 = vpack.c.bf16 %v1541, %v1537
      %v1662 = vpack.c.bf16 %v1542, %v1538
      %v1663 = vpack.c.bf16 %v1547, %v1543
      %v1664 = vpack.c.bf16 %v1548, %v1544
      %v1665 = vpack.c.bf16 %v1549, %v1545
      %v1666 = vpack.c.bf16 %v1550, %v1546
      %v1667 = vpack.c.bf16 %v1555, %v1551
      %v1668 = vpack.c.bf16 %v1556, %v1552
      %v1669 = vpack.c.bf16 %v1557, %v1553
      %v1670 = vpack.c.bf16 %v1558, %v1554
      %v1671 = vpack.c.bf16 %v1563, %v1559
      %v1672 = vpack.c.bf16 %v1564, %v1560
      %v1673 = vpack.c.bf16 %v1565, %v1561
      %v1674 = vpack.c.bf16 %v1566, %v1562
      %v1675 = vpack.c.bf16 %v1571, %v1567
      %v1676 = vpack.c.bf16 %v1572, %v1568
      %v1677 = vpack.c.bf16 %v1573, %v1569
      %v1678 = vpack.c.bf16 %v1574, %v1570
      %v1679 = vpack.c.bf16 %v1579, %v1575
      %v1680 = vpack.c.bf16 %v1580, %v1576
      %v1681 = vpack.c.bf16 %v1581, %v1577
      %v1682 = vpack.c.bf16 %v1582, %v1578
      %v1683 = vpack.c.bf16 %v1587, %v1583
      %v1684 = vpack.c.bf16 %v1588, %v1584
      %v1685 = vpack.c.bf16 %v1589, %v1585
      %v1686 = vpack.c.bf16 %v1590, %v1586
      %v1687 = vpack.c.bf16 %v1595, %v1591
      %v1688 = vpack.c.bf16 %v1596, %v1592
      %v1689 = vpack.c.bf16 %v1597, %v1593
      %v1690 = vpack.c.bf16 %v1598, %v1594
      %v1691 = vpack.c.bf16 %v1603, %v1599
      %v1692 = vpack.c.bf16 %v1604, %v1600
      %v1693 = vpack.c.bf16 %v1605, %v1601
      %v1694 = vpack.c.bf16 %v1606, %v1602
      %v1695 = vpack.c.bf16 %v1611, %v1607
      %v1696 = vpack.c.bf16 %v1612, %v1608
      %v1697 = vpack.c.bf16 %v1613, %v1609
      %v1698 = vpack.c.bf16 %v1614, %v1610
      %v1699 = vpack.c.bf16 %v1619, %v1615
      %v1700 = vpack.c.bf16 %v1620, %v1616
      %v1701 = vpack.c.bf16 %v1621, %v1617
      %v1702 = vpack.c.bf16 %v1622, %v1618
      %v1703 = vpack.c.bf16 %v1627, %v1623
      %v1704 = vpack.c.bf16 %v1628, %v1624
      %v1705 = vpack.c.bf16 %v1629, %v1625
      %v1706 = vpack.c.bf16 %v1630, %v1626
      %v1707 = vpack.c.bf16 %v1635, %v1631
      %v1708 = vpack.c.bf16 %v1636, %v1632
      %v1709 = vpack.c.bf16 %v1637, %v1633
      %v1710 = vpack.c.bf16 %v1638, %v1634
      %v1711 = vpack.c.bf16 %v1643, %v1639
      %v1712 = vpack.c.bf16 %v1644, %v1640
      %v1713 = vpack.c.bf16 %v1645, %v1641
      %v1714 = vpack.c.bf16 %v1646, %v1642
      %v1715 = vpack.c.bf16 %v1651, %v1647
      %v1716 = vpack.c.bf16 %v1652, %v1648
      %v1717 = vpack.c.bf16 %v1653, %v1649
      %v1718 = vpack.c.bf16 %v1654, %v1650
      %v1719 = vld [vmem:[%s3] sm:$0xff]
      %v1720 = vld [vmem:[%s3 + $0x8] sm:$0xff]
      %v1721 = vld [vmem:[%s3 + $0x10] sm:$0xff]
      %v1722 = vld [vmem:[%s3 + $0x18] sm:$0xff]
      %v1723 = vld [vmem:[%s3 + $0x20] sm:$0xff]
      %v1724 = vld [vmem:[%s3 + $0x28] sm:$0xff]
      %v1725 = vld [vmem:[%s3 + $0x30] sm:$0xff]
      %v1726 = vld [vmem:[%s3 + $0x38] sm:$0xff]
      %v1727 = vld [vmem:[%s3 + $0x40] sm:$0xff]
      %v1728 = vld [vmem:[%s3 + $0x48] sm:$0xff]
      %v1729 = vld [vmem:[%s3 + $0x50] sm:$0xff]
      %v1730 = vld [vmem:[%s3 + $0x58] sm:$0xff]
      %v1731 = vld [vmem:[%s3 + $0x60] sm:$0xff]
      %v1732 = vld [vmem:[%s3 + $0x68] sm:$0xff]
      %v1733 = vld [vmem:[%s3 + $0x70] sm:$0xff]
      %v1734 = vld [vmem:[%s3 + $0x78] sm:$0xff]
      %v1735 = vld [vmem:[%s4] sm:$0xff]
      %v1736 = vld [vmem:[%s4 + $0x8] sm:$0xff]
      %v1737 = vld [vmem:[%s4 + $0x10] sm:$0xff]
      %v1738 = vld [vmem:[%s4 + $0x18] sm:$0xff]
      %v1739 = vld [vmem:[%s4 + $0x20] sm:$0xff]
      %v1740 = vld [vmem:[%s4 + $0x28] sm:$0xff]
      %v1741 = vld [vmem:[%s4 + $0x30] sm:$0xff]
      %v1742 = vld [vmem:[%s4 + $0x38] sm:$0xff]
      %v1743 = vld [vmem:[%s4 + $0x40] sm:$0xff]
      %v1744 = vld [vmem:[%s4 + $0x48] sm:$0xff]
      %v1745 = vld [vmem:[%s4 + $0x50] sm:$0xff]
      %v1746 = vld [vmem:[%s4 + $0x58] sm:$0xff]
      %v1747 = vld [vmem:[%s4 + $0x60] sm:$0xff]
      %v1748 = vld [vmem:[%s4 + $0x68] sm:$0xff]
      %v1749 = vld [vmem:[%s4 + $0x70] sm:$0xff]
      %v1750 = vld [vmem:[%s4 + $0x78] sm:$0xff]
      %1752 = vset.pattern.permute.xlu0 0
      %1753 = vperm.xlu0 %1752, %v1735
      %v1754 = vpop.permute.xlu0 %1753
      %1757 = vset.pattern.permute.xlu0 0
      %1758 = vperm.xlu0 %1757, %v1736
      %v1759 = vpop.permute.xlu0 %1758
      %1762 = vset.pattern.permute.xlu0 0
      %1763 = vperm.xlu0 %1762, %v1737
      %v1764 = vpop.permute.xlu0 %1763
      %1767 = vset.pattern.permute.xlu0 0
      %1768 = vperm.xlu0 %1767, %v1738
      %v1769 = vpop.permute.xlu0 %1768
      %1772 = vset.pattern.permute.xlu0 0
      %1773 = vperm.xlu0 %1772, %v1739
      %v1774 = vpop.permute.xlu0 %1773
      %1777 = vset.pattern.permute.xlu0 0
      %1778 = vperm.xlu0 %1777, %v1740
      %v1779 = vpop.permute.xlu0 %1778
      %1782 = vset.pattern.permute.xlu0 0
      %1783 = vperm.xlu0 %1782, %v1741
      %v1784 = vpop.permute.xlu0 %1783
      %1787 = vset.pattern.permute.xlu0 0
      %1788 = vperm.xlu0 %1787, %v1742
      %v1789 = vpop.permute.xlu0 %1788
      %1792 = vset.pattern.permute.xlu0 0
      %1793 = vperm.xlu0 %1792, %v1743
      %v1794 = vpop.permute.xlu0 %1793
      %1797 = vset.pattern.permute.xlu0 0
      %1798 = vperm.xlu0 %1797, %v1744
      %v1799 = vpop.permute.xlu0 %1798
      %1802 = vset.pattern.permute.xlu0 0
      %1803 = vperm.xlu0 %1802, %v1745
      %v1804 = vpop.permute.xlu0 %1803
      %1807 = vset.pattern.permute.xlu0 0
      %1808 = vperm.xlu0 %1807, %v1746
      %v1809 = vpop.permute.xlu0 %1808
      %1812 = vset.pattern.permute.xlu0 0
      %1813 = vperm.xlu0 %1812, %v1747
      %v1814 = vpop.permute.xlu0 %1813
      %1817 = vset.pattern.permute.xlu0 0
      %1818 = vperm.xlu0 %1817, %v1748
      %v1819 = vpop.permute.xlu0 %1818
      %1822 = vset.pattern.permute.xlu0 0
      %1823 = vperm.xlu0 %1822, %v1749
      %v1824 = vpop.permute.xlu0 %1823
      %1827 = vset.pattern.permute.xlu0 0
      %1828 = vperm.xlu0 %1827, %v1750
      %v1829 = vpop.permute.xlu0 %1828
      %v1847 = vunpack.c.l.b16 %v1719
      %v1848 = vunpack.c.h.b16 %v1719
      %v1849 = vunpack.c.l.b16 %v1720
      %v1850 = vunpack.c.h.b16 %v1720
      %v1851 = vunpack.c.l.b16 %v1721
      %v1852 = vunpack.c.h.b16 %v1721
      %v1853 = vunpack.c.l.b16 %v1722
      %v1854 = vunpack.c.h.b16 %v1722
      %v1855 = vunpack.c.l.b16 %v1723
      %v1856 = vunpack.c.h.b16 %v1723
      %v1857 = vunpack.c.l.b16 %v1724
      %v1858 = vunpack.c.h.b16 %v1724
      %v1859 = vunpack.c.l.b16 %v1725
      %v1860 = vunpack.c.h.b16 %v1725
      %v1861 = vunpack.c.l.b16 %v1726
      %v1862 = vunpack.c.h.b16 %v1726
      %v1863 = vunpack.c.l.b16 %v1727
      %v1864 = vunpack.c.h.b16 %v1727
      %v1865 = vunpack.c.l.b16 %v1728
      %v1866 = vunpack.c.h.b16 %v1728
      %v1867 = vunpack.c.l.b16 %v1729
      %v1868 = vunpack.c.h.b16 %v1729
      %v1869 = vunpack.c.l.b16 %v1730
      %v1870 = vunpack.c.h.b16 %v1730
      %v1871 = vunpack.c.l.b16 %v1731
      %v1872 = vunpack.c.h.b16 %v1731
      %v1873 = vunpack.c.l.b16 %v1732
      %v1874 = vunpack.c.h.b16 %v1732
      %v1875 = vunpack.c.l.b16 %v1733
      %v1876 = vunpack.c.h.b16 %v1733
      %v1877 = vunpack.c.l.b16 %v1734
      %v1878 = vunpack.c.h.b16 %v1734
      %v1879 = vpack.c.b16 %v1849, %v1847
      %v1880 = vpack.c.b16 %v1850, %v1848
      %v1881 = vpack.c.b16 %v1853, %v1851
      %v1882 = vpack.c.b16 %v1854, %v1852
      %v1883 = vpack.c.b16 %v1857, %v1855
      %v1884 = vpack.c.b16 %v1858, %v1856
      %v1885 = vpack.c.b16 %v1861, %v1859
      %v1886 = vpack.c.b16 %v1862, %v1860
      %v1887 = vpack.c.b16 %v1865, %v1863
      %v1888 = vpack.c.b16 %v1866, %v1864
      %v1889 = vpack.c.b16 %v1869, %v1867
      %v1890 = vpack.c.b16 %v1870, %v1868
      %v1891 = vpack.c.b16 %v1873, %v1871
      %v1892 = vpack.c.b16 %v1874, %v1872
      %v1893 = vpack.c.b16 %v1877, %v1875
      %v1894 = vpack.c.b16 %v1878, %v1876
      %1911 = vmatprep.subr.bf16.mxu0 %v1656
      %1912 = vmatpush1.bf16.msra.mxu0 %v1655
      %1913 = vmatprep.subr.bf16.mxu0 %v1660
      %1914 = vmatpush1.bf16.msra.mxu0 %v1659
      %1915 = vmatprep.subr.bf16.mxu0 %v1664
      %1916 = vmatpush1.bf16.msra.mxu0 %v1663
      %1917 = vmatprep.subr.bf16.mxu0 %v1668
      %1918 = vmatpush1.bf16.msra.mxu0 %v1667
      %1919 = vmatprep.subr.bf16.mxu0 %v1672
      %1920 = vmatpush1.bf16.msra.mxu0 %v1671
      %1921 = vmatprep.subr.bf16.mxu0 %v1676
      %1922 = vmatpush1.bf16.msra.mxu0 %v1675
      %1923 = vmatprep.subr.bf16.mxu0 %v1680
      %1924 = vmatpush1.bf16.msra.mxu0 %v1679
      %1925 = vmatprep.subr.bf16.mxu0 %v1684
      %1926 = vmatpush1.bf16.msra.mxu0 %v1683
      %1927 = vmatprep.subr.bf16.mxu0 %v1688
      %1928 = vmatpush1.bf16.msra.mxu0 %v1687
      %1929 = vmatprep.subr.bf16.mxu0 %v1692
      %1930 = vmatpush1.bf16.msra.mxu0 %v1691
      %1931 = vmatprep.subr.bf16.mxu0 %v1696
      %1932 = vmatpush1.bf16.msra.mxu0 %v1695
      %1933 = vmatprep.subr.bf16.mxu0 %v1700
      %1934 = vmatpush1.bf16.msra.mxu0 %v1699
      %1935 = vmatprep.subr.bf16.mxu0 %v1704
      %1936 = vmatpush1.bf16.msra.mxu0 %v1703
      %1937 = vmatprep.subr.bf16.mxu0 %v1708
      %1938 = vmatpush1.bf16.msra.mxu0 %v1707
      %1939 = vmatprep.subr.bf16.mxu0 %v1712
      %1940 = vmatpush1.bf16.msra.mxu0 %v1711
      %1941 = vmatprep.subr.bf16.mxu0 %v1716
      %1942 = vmatpush1.bf16.msra.mxu0 %v1715
      %1943 = vmatprep.mubr.bf16.mxu0 %v1880
      %1944 = vmatmul.mubr.bf16.gmra.mrb[0].mxu0 %v1879
      %v1945 = vpop.f32.mrb[0].mxu0
      %v1946 = vadd.f32 %v1754, %v1945
      %v1947 = vpop.f32.mrb[0].mxu0
      %v1948 = vadd.f32 %v1754, %v1947
      %v1949 = vpop.f32.mrb[0].mxu0
      %v1950 = vadd.f32 %v1759, %v1949
      %v1951 = vpop.f32.mrb[0].mxu0
      %v1952 = vadd.f32 %v1759, %v1951
      %1953 = vmatprep.mubr.bf16.mxu0 %v1882
      %1954 = vmatmul.mubr.bf16.gmra.mrb[0].mxu0 %v1881
      %v1955 = vpop.f32.mrb[0].mxu0
      %v1956 = vadd.f32 %v1764, %v1955
      %v1957 = vpop.f32.mrb[0].mxu0
      %v1958 = vadd.f32 %v1764, %v1957
      %v1959 = vpop.f32.mrb[0].mxu0
      %v1960 = vadd.f32 %v1769, %v1959
      %v1961 = vpop.f32.mrb[0].mxu0
      %v1962 = vadd.f32 %v1769, %v1961
      %1963 = vmatprep.mubr.bf16.mxu0 %v1884
      %1964 = vmatmul.mubr.bf16.gmra.mrb[0].mxu0 %v1883
      %v1965 = vpop.f32.mrb[0].mxu0
      %v1966 = vadd.f32 %v1774, %v1965
      %v1967 = vpop.f32.mrb[0].mxu0
      %v1968 = vadd.f32 %v1774, %v1967
      %v1969 = vpop.f32.mrb[0].mxu0
      %v1970 = vadd.f32 %v1779, %v1969
      %v1971 = vpop.f32.mrb[0].mxu0
      %v1972 = vadd.f32 %v1779, %v1971
      %1973 = vmatprep.mubr.bf16.mxu0 %v1886
      %1974 = vmatmul.mubr.bf16.gmra.mrb[0].mxu0 %v1885
      %v1975 = vpop.f32.mrb[0].mxu0
      %v1976 = vadd.f32 %v1784, %v1975
      %v1977 = vpop.f32.mrb[0].mxu0
      %v1978 = vadd.f32 %v1784, %v1977
      %v1979 = vpop.f32.mrb[0].mxu0
      %v1980 = vadd.f32 %v1789, %v1979
      %v1981 = vpop.f32.mrb[0].mxu0
      %v1982 = vadd.f32 %v1789, %v1981
      %1983 = vmatprep.mubr.bf16.mxu0 %v1888
      %1984 = vmatmul.mubr.bf16.gmra.mrb[0].mxu0 %v1887
      %v1985 = vpop.f32.mrb[0].mxu0
      %v1986 = vadd.f32 %v1794, %v1985
      %v1987 = vpop.f32.mrb[0].mxu0
      %v1988 = vadd.f32 %v1794, %v1987
      %v1989 = vpop.f32.mrb[0].mxu0
      %v1990 = vadd.f32 %v1799, %v1989
      %v1991 = vpop.f32.mrb[0].mxu0
      %v1992 = vadd.f32 %v1799, %v1991
      %1993 = vmatprep.mubr.bf16.mxu0 %v1890
      %1994 = vmatmul.mubr.bf16.gmra.mrb[0].mxu0 %v1889
      %v1995 = vpop.f32.mrb[0].mxu0
      %v1996 = vadd.f32 %v1804, %v1995
      %v1997 = vpop.f32.mrb[0].mxu0
      %v1998 = vadd.f32 %v1804, %v1997
      %v1999 = vpop.f32.mrb[0].mxu0
      %v2000 = vadd.f32 %v1809, %v1999
      %v2001 = vpop.f32.mrb[0].mxu0
      %v2002 = vadd.f32 %v1809, %v2001
      %2003 = vmatprep.mubr.bf16.mxu0 %v1892
      %2004 = vmatmul.mubr.bf16.gmra.mrb[0].mxu0 %v1891
      %v2005 = vpop.f32.mrb[0].mxu0
      %v2006 = vadd.f32 %v1814, %v2005
      %v2007 = vpop.f32.mrb[0].mxu0
      %v2008 = vadd.f32 %v1814, %v2007
      %v2009 = vpop.f32.mrb[0].mxu0
      %v2010 = vadd.f32 %v1819, %v2009
      %v2011 = vpop.f32.mrb[0].mxu0
      %v2012 = vadd.f32 %v1819, %v2011
      %2013 = vmatprep.mubr.bf16.mxu0 %v1894
      %2014 = vmatmul.mubr.bf16.gmra.mrb[0].mxu0 %v1893
      %v2015 = vpop.f32.mrb[0].mxu0
      %v2016 = vadd.f32 %v1824, %v2015
      %v2017 = vpop.f32.mrb[0].mxu0
      %v2018 = vadd.f32 %v1824, %v2017
      %v2019 = vpop.f32.mrb[0].mxu0
      %v2020 = vadd.f32 %v1829, %v2019
      %v2021 = vpop.f32.mrb[0].mxu0
      %v2022 = vadd.f32 %v1829, %v2021
      %2023 = vdwg.mxu0
      %2024 = vmatprep.subr.bf16.mxu0 %v1658
      %2025 = vmatpush1.bf16.msra.mxu0 %v1657
      %2026 = vmatprep.subr.bf16.mxu0 %v1662
      %2027 = vmatpush1.bf16.msra.mxu0 %v1661
      %2028 = vmatprep.subr.bf16.mxu0 %v1666
      %2029 = vmatpush1.bf16.msra.mxu0 %v1665
      %2030 = vmatprep.subr.bf16.mxu0 %v1670
      %2031 = vmatpush1.bf16.msra.mxu0 %v1669
      %2032 = vmatprep.subr.bf16.mxu0 %v1674
      %2033 = vmatpush1.bf16.msra.mxu0 %v1673
      %2034 = vmatprep.subr.bf16.mxu0 %v1678
      %2035 = vmatpush1.bf16.msra.mxu0 %v1677
      %2036 = vmatprep.subr.bf16.mxu0 %v1682
      %2037 = vmatpush1.bf16.msra.mxu0 %v1681
      %2038 = vmatprep.subr.bf16.mxu0 %v1686
      %2039 = vmatpush1.bf16.msra.mxu0 %v1685
      %2040 = vmatprep.subr.bf16.mxu0 %v1690
      %2041 = vmatpush1.bf16.msra.mxu0 %v1689
      %2042 = vmatprep.subr.bf16.mxu0 %v1694
      %2043 = vmatpush1.bf16.msra.mxu0 %v1693
      %2044 = vmatprep.subr.bf16.mxu0 %v1698
      %2045 = vmatpush1.bf16.msra.mxu0 %v1697
      %2046 = vmatprep.subr.bf16.mxu0 %v1702
      %2047 = vmatpush1.bf16.msra.mxu0 %v1701
      %2048 = vmatprep.subr.bf16.mxu0 %v1706
      %2049 = vmatpush1.bf16.msra.mxu0 %v1705
      %2050 = vmatprep.subr.bf16.mxu0 %v1710
      %2051 = vmatpush1.bf16.msra.mxu0 %v1709
      %2052 = vmatprep.subr.bf16.mxu0 %v1714
      %2053 = vmatpush1.bf16.msra.mxu0 %v1713
      %2054 = vmatprep.subr.bf16.mxu0 %v1718
      %2055 = vmatpush1.bf16.msra.mxu0 %v1717
      %2056 = vmatprep.mubr.bf16.mxu0 %v1880
      %2057 = vmatmul.mubr.bf16.gmra.mrb[0].mxu0 %v1879
      %v2058 = vpop.f32.mrb[0].mxu0
      %v2059 = vadd.f32 %v1754, %v2058
      %v2060 = vpop.f32.mrb[0].mxu0
      %v2061 = vadd.f32 %v1754, %v2060
      %v2062 = vpop.f32.mrb[0].mxu0
      %v2063 = vadd.f32 %v1759, %v2062
      %v2064 = vpop.f32.mrb[0].mxu0
      %v2065 = vadd.f32 %v1759, %v2064
      %2066 = vmatprep.mubr.bf16.mxu0 %v1882
      %2067 = vmatmul.mubr.bf16.gmra.mrb[0].mxu0 %v1881
      %v2068 = vpop.f32.mrb[0].mxu0
      %v2069 = vadd.f32 %v1764, %v2068
      %v2070 = vpop.f32.mrb[0].mxu0
      %v2071 = vadd.f32 %v1764, %v2070
      %v2072 = vpop.f32.mrb[0].mxu0
      %v2073 = vadd.f32 %v1769, %v2072
      %v2074 = vpop.f32.mrb[0].mxu0
      %v2075 = vadd.f32 %v1769, %v2074
      %2076 = vmatprep.mubr.bf16.mxu0 %v1884
      %2077 = vmatmul.mubr.bf16.gmra.mrb[0].mxu0 %v1883
      %v2078 = vpop.f32.mrb[0].mxu0
      %v2079 = vadd.f32 %v1774, %v2078
      %v2080 = vpop.f32.mrb[0].mxu0
      %v2081 = vadd.f32 %v1774, %v2080
      %v2082 = vpop.f32.mrb[0].mxu0
      %v2083 = vadd.f32 %v1779, %v2082
      %v2084 = vpop.f32.mrb[0].mxu0
      %v2085 = vadd.f32 %v1779, %v2084
      %2086 = vmatprep.mubr.bf16.mxu0 %v1886
      %2087 = vmatmul.mubr.bf16.gmra.mrb[0].mxu0 %v1885
      %v2088 = vpop.f32.mrb[0].mxu0
      %v2089 = vadd.f32 %v1784, %v2088
      %v2090 = vpop.f32.mrb[0].mxu0
      %v2091 = vadd.f32 %v1784, %v2090
      %v2092 = vpop.f32.mrb[0].mxu0
      %v2093 = vadd.f32 %v1789, %v2092
      %v2094 = vpop.f32.mrb[0].mxu0
      %v2095 = vadd.f32 %v1789, %v2094
      %2096 = vmatprep.mubr.bf16.mxu0 %v1888
      %2097 = vmatmul.mubr.bf16.gmra.mrb[0].mxu0 %v1887
      %v2098 = vpop.f32.mrb[0].mxu0
      %v2099 = vadd.f32 %v1794, %v2098
      %v2100 = vpop.f32.mrb[0].mxu0
      %v2101 = vadd.f32 %v1794, %v2100
      %v2102 = vpop.f32.mrb[0].mxu0
      %v2103 = vadd.f32 %v1799, %v2102
      %v2104 = vpop.f32.mrb[0].mxu0
      %v2105 = vadd.f32 %v1799, %v2104
      %2106 = vmatprep.mubr.bf16.mxu0 %v1890
      %2107 = vmatmul.mubr.bf16.gmra.mrb[0].mxu0 %v1889
      %v2108 = vpop.f32.mrb[0].mxu0
      %v2109 = vadd.f32 %v1804, %v2108
      %v2110 = vpop.f32.mrb[0].mxu0
      %v2111 = vadd.f32 %v1804, %v2110
      %v2112 = vpop.f32.mrb[0].mxu0
      %v2113 = vadd.f32 %v1809, %v2112
      %v2114 = vpop.f32.mrb[0].mxu0
      %v2115 = vadd.f32 %v1809, %v2114
      %2116 = vmatprep.mubr.bf16.mxu0 %v1892
      %2117 = vmatmul.mubr.bf16.gmra.mrb[0].mxu0 %v1891
      %v2118 = vpop.f32.mrb[0].mxu0
      %v2119 = vadd.f32 %v1814, %v2118
      %v2120 = vpop.f32.mrb[0].mxu0
      %v2121 = vadd.f32 %v1814, %v2120
      %v2122 = vpop.f32.mrb[0].mxu0
      %v2123 = vadd.f32 %v1819, %v2122
      %v2124 = vpop.f32.mrb[0].mxu0
      %v2125 = vadd.f32 %v1819, %v2124
      %2126 = vmatprep.mubr.bf16.mxu0 %v1894
      %2127 = vmatmul.mubr.bf16.gmra.mrb[0].mxu0 %v1893
      %v2128 = vpop.f32.mrb[0].mxu0
      %v2129 = vadd.f32 %v1824, %v2128
      %v2130 = vpop.f32.mrb[0].mxu0
      %v2131 = vadd.f32 %v1824, %v2130
      %v2132 = vpop.f32.mrb[0].mxu0
      %v2133 = vadd.f32 %v1829, %v2132
      %v2134 = vpop.f32.mrb[0].mxu0
      %v2135 = vadd.f32 %v1829, %v2134
      %2136 = vdwg.mxu0
      %v2137 = vmax.f32 %v1946, 0.0
      %v2138 = vmax.f32 %v1948, 0.0
      %v2139 = vmax.f32 %v2059, 0.0
      %v2140 = vmax.f32 %v2061, 0.0
      %v2141 = vmax.f32 %v1950, 0.0
      %v2142 = vmax.f32 %v1952, 0.0
      %v2143 = vmax.f32 %v2063, 0.0
      %v2144 = vmax.f32 %v2065, 0.0
      %v2145 = vmax.f32 %v1956, 0.0
      %v2146 = vmax.f32 %v1958, 0.0
      %v2147 = vmax.f32 %v2069, 0.0
      %v2148 = vmax.f32 %v2071, 0.0
      %v2149 = vmax.f32 %v1960, 0.0
      %v2150 = vmax.f32 %v1962, 0.0
      %v2151 = vmax.f32 %v2073, 0.0
      %v2152 = vmax.f32 %v2075, 0.0
      %v2153 = vmax.f32 %v1966, 0.0
      %v2154 = vmax.f32 %v1968, 0.0
      %v2155 = vmax.f32 %v2079, 0.0
      %v2156 = vmax.f32 %v2081, 0.0
      %v2157 = vmax.f32 %v1970, 0.0
      %v2158 = vmax.f32 %v1972, 0.0
      %v2159 = vmax.f32 %v2083, 0.0
      %v2160 = vmax.f32 %v2085, 0.0
      %v2161 = vmax.f32 %v1976, 0.0
      %v2162 = vmax.f32 %v1978, 0.0
      %v2163 = vmax.f32 %v2089, 0.0
      %v2164 = vmax.f32 %v2091, 0.0
      %v2165 = vmax.f32 %v1980, 0.0
      %v2166 = vmax.f32 %v1982, 0.0
      %v2167 = vmax.f32 %v2093, 0.0
      %v2168 = vmax.f32 %v2095, 0.0
      %v2169 = vmax.f32 %v1986, 0.0
      %v2170 = vmax.f32 %v1988, 0.0
      %v2171 = vmax.f32 %v2099, 0.0
      %v2172 = vmax.f32 %v2101, 0.0
      %v2173 = vmax.f32 %v1990, 0.0
      %v2174 = vmax.f32 %v1992, 0.0
      %v2175 = vmax.f32 %v2103, 0.0
      %v2176 = vmax.f32 %v2105, 0.0
      %v2177 = vmax.f32 %v1996, 0.0
      %v2178 = vmax.f32 %v1998, 0.0
      %v2179 = vmax.f32 %v2109, 0.0
      %v2180 = vmax.f32 %v2111, 0.0
      %v2181 = vmax.f32 %v2000, 0.0
      %v2182 = vmax.f32 %v2002, 0.0
      %v2183 = vmax.f32 %v2113, 0.0
      %v2184 = vmax.f32 %v2115, 0.0
      %v2185 = vmax.f32 %v2006, 0.0
      %v2186 = vmax.f32 %v2008, 0.0
      %v2187 = vmax.f32 %v2119, 0.0
      %v2188 = vmax.f32 %v2121, 0.0
      %v2189 = vmax.f32 %v2010, 0.0
      %v2190 = vmax.f32 %v2012, 0.0
      %v2191 = vmax.f32 %v2123, 0.0
      %v2192 = vmax.f32 %v2125, 0.0
      %v2193 = vmax.f32 %v2016, 0.0
      %v2194 = vmax.f32 %v2018, 0.0
      %v2195 = vmax.f32 %v2129, 0.0
      %v2196 = vmax.f32 %v2131, 0.0
      %v2197 = vmax.f32 %v2020, 0.0
      %v2198 = vmax.f32 %v2022, 0.0
      %v2199 = vmax.f32 %v2133, 0.0
      %v2200 = vmax.f32 %v2135, 0.0
      %v2201 = vpack.c.bf16 %v2141, %v2137
      %v2202 = vpack.c.bf16 %v2142, %v2138
      %v2203 = vpack.c.bf16 %v2143, %v2139
      %v2204 = vpack.c.bf16 %v2144, %v2140
      %v2205 = vpack.c.bf16 %v2149, %v2145
      %v2206 = vpack.c.bf16 %v2150, %v2146
      %v2207 = vpack.c.bf16 %v2151, %v2147
      %v2208 = vpack.c.bf16 %v2152, %v2148
      %v2209 = vpack.c.bf16 %v2157, %v2153
      %v2210 = vpack.c.bf16 %v2158, %v2154
      %v2211 = vpack.c.bf16 %v2159, %v2155
      %v2212 = vpack.c.bf16 %v2160, %v2156
      %v2213 = vpack.c.bf16 %v2165, %v2161
      %v2214 = vpack.c.bf16 %v2166, %v2162
      %v2215 = vpack.c.bf16 %v2167, %v2163
      %v2216 = vpack.c.bf16 %v2168, %v2164
      %v2217 = vpack.c.bf16 %v2173, %v2169
      %v2218 = vpack.c.bf16 %v2174, %v2170
      %v2219 = vpack.c.bf16 %v2175, %v2171
      %v2220 = vpack.c.bf16 %v2176, %v2172
      %v2221 = vpack.c.bf16 %v2181, %v2177
      %v2222 = vpack.c.bf16 %v2182, %v2178
      %v2223 = vpack.c.bf16 %v2183, %v2179
      %v2224 = vpack.c.bf16 %v2184, %v2180
      %v2225 = vpack.c.bf16 %v2189, %v2185
      %v2226 = vpack.c.bf16 %v2190, %v2186
      %v2227 = vpack.c.bf16 %v2191, %v2187
      %v2228 = vpack.c.bf16 %v2192, %v2188
      %v2229 = vpack.c.bf16 %v2197, %v2193
      %v2230 = vpack.c.bf16 %v2198, %v2194
      %v2231 = vpack.c.bf16 %v2199, %v2195
      %v2232 = vpack.c.bf16 %v2200, %v2196
      %v2233 = vld [vmem:[%s5] sm:$0xf]
      %v2234 = vld [vmem:[%s5 + $0x4] sm:$0xf]
      %v2235 = vld [vmem:[%s5 + $0x8] sm:$0xf]
      %v2236 = vld [vmem:[%s5 + $0xc] sm:$0xf]
      %v2237 = vld [vmem:[%s5 + $0x10] sm:$0xf]
      %v2238 = vld [vmem:[%s5 + $0x14] sm:$0xf]
      %v2239 = vld [vmem:[%s5 + $0x18] sm:$0xf]
      %v2240 = vld [vmem:[%s5 + $0x1c] sm:$0xf]
      %v2241 = vld [vmem:[%s6] sm:$0xff]
      %v2242 = vld [vmem:[%s6 + $0x8] sm:$0xff]
      %v2243 = vld [vmem:[%s6 + $0x10] sm:$0xff]
      %v2244 = vld [vmem:[%s6 + $0x18] sm:$0xff]
      %v2245 = vld [vmem:[%s6 + $0x20] sm:$0xff]
      %v2246 = vld [vmem:[%s6 + $0x28] sm:$0xff]
      %v2247 = vld [vmem:[%s6 + $0x30] sm:$0xff]
      %v2248 = vld [vmem:[%s6 + $0x38] sm:$0xff]
      %2250 = vset.pattern.permute.xlu0 0
      %2251 = vperm.xlu0 %2250, %v2241
      %v2252 = vpop.permute.xlu0 %2251
      %2255 = vset.pattern.permute.xlu0 0
      %2256 = vperm.xlu0 %2255, %v2242
      %v2257 = vpop.permute.xlu0 %2256
      %2260 = vset.pattern.permute.xlu0 0
      %2261 = vperm.xlu0 %2260, %v2243
      %v2262 = vpop.permute.xlu0 %2261
      %2265 = vset.pattern.permute.xlu0 0
      %2266 = vperm.xlu0 %2265, %v2244
      %v2267 = vpop.permute.xlu0 %2266
      %2270 = vset.pattern.permute.xlu0 0
      %2271 = vperm.xlu0 %2270, %v2245
      %v2272 = vpop.permute.xlu0 %2271
      %2275 = vset.pattern.permute.xlu0 0
      %2276 = vperm.xlu0 %2275, %v2246
      %v2277 = vpop.permute.xlu0 %2276
      %2280 = vset.pattern.permute.xlu0 0
      %2281 = vperm.xlu0 %2280, %v2247
      %v2282 = vpop.permute.xlu0 %2281
      %2285 = vset.pattern.permute.xlu0 0
      %2286 = vperm.xlu0 %2285, %v2248
      %v2287 = vpop.permute.xlu0 %2286
      %v2297 = vunpack.c.l.b16 %v2233
      %v2298 = vunpack.c.l.b16 %v2234
      %v2299 = vunpack.c.l.b16 %v2235
      %v2300 = vunpack.c.l.b16 %v2236
      %v2301 = vunpack.c.l.b16 %v2237
      %v2302 = vunpack.c.l.b16 %v2238
      %v2303 = vunpack.c.l.b16 %v2239
      %v2304 = vunpack.c.l.b16 %v2240
      %v2305 = vpack.c.b16 %v2298, %v2297
      %v2306 = vpack.c.b16 %v2300, %v2299
      %v2307 = vpack.c.b16 %v2302, %v2301
      %v2308 = vpack.c.b16 %v2304, %v2303
      %2313 = vmatprep.subr.bf16.mxu0 %v2202
      %2314 = vmatpush1.bf16.msra.mxu0 %v2201
      %2315 = vmatprep.subr.bf16.mxu0 %v2206
      %2316 = vmatpush1.bf16.msra.mxu0 %v2205
      %2317 = vmatprep.subr.bf16.mxu0 %v2210
      %2318 = vmatpush1.bf16.msra.mxu0 %v2209
      %2319 = vmatprep.subr.bf16.mxu0 %v2214
      %2320 = vmatpush1.bf16.msra.mxu0 %v2213
      %2321 = vmatprep.subr.bf16.mxu0 %v2218
      %2322 = vmatpush1.bf16.msra.mxu0 %v2217
      %2323 = vmatprep.subr.bf16.mxu0 %v2222
      %2324 = vmatpush1.bf16.msra.mxu0 %v2221
      %2325 = vmatprep.subr.bf16.mxu0 %v2226
      %2326 = vmatpush1.bf16.msra.mxu0 %v2225
      %2327 = vmatprep.subr.bf16.mxu0 %v2230
      %2328 = vmatpush1.bf16.msra.mxu0 %v2229
      %2329 = vmatprep.subr.bf16.mxu0 0
      %2330 = vmatpush1.bf16.msra.mxu0 0
      %2331 = vmatprep.subr.bf16.mxu0 0
      %2332 = vmatpush1.bf16.msra.mxu0 0
      %2333 = vmatprep.subr.bf16.mxu0 0
      %2334 = vmatpush1.bf16.msra.mxu0 0
      %2335 = vmatprep.subr.bf16.mxu0 0
      %2336 = vmatpush1.bf16.msra.mxu0 0
      %2337 = vmatprep.subr.bf16.mxu0 0
      %2338 = vmatpush1.bf16.msra.mxu0 0
      %2339 = vmatprep.subr.bf16.mxu0 0
      %2340 = vmatpush1.bf16.msra.mxu0 0
      %2341 = vmatprep.subr.bf16.mxu0 0
      %2342 = vmatpush1.bf16.msra.mxu0 0
      %2343 = vmatprep.subr.bf16.mxu0 0
      %2344 = vmatpush1.bf16.msra.mxu0 0
      %2345 = vmatprep.mubr.bf16.mxu0 0
      %2346 = vmatmul.mubr.bf16.gmra.mrb[0].mxu0 %v2305
      %v2347 = vpop.f32.mrb[0].mxu0
      %v2348 = vadd.f32 %v2252, %v2347
      %v2349 = vpop.f32.mrb[0].mxu0
      %v2350 = vadd.f32 %v2252, %v2349
      %v2351 = vpop.f32.mrb[0].mxu0
      %v2352 = vadd.f32 %v2257, %v2351
      %v2353 = vpop.f32.mrb[0].mxu0
      %v2354 = vadd.f32 %v2257, %v2353
      %2355 = vmatprep.mubr.bf16.mxu0 0
      %2356 = vmatmul.mubr.bf16.gmra.mrb[0].mxu0 %v2306
      %v2357 = vpop.f32.mrb[0].mxu0
      %v2358 = vadd.f32 %v2262, %v2357
      %v2359 = vpop.f32.mrb[0].mxu0
      %v2360 = vadd.f32 %v2262, %v2359
      %v2361 = vpop.f32.mrb[0].mxu0
      %v2362 = vadd.f32 %v2267, %v2361
      %v2363 = vpop.f32.mrb[0].mxu0
      %v2364 = vadd.f32 %v2267, %v2363
      %2365 = vmatprep.mubr.bf16.mxu0 0
      %2366 = vmatmul.mubr.bf16.gmra.mrb[0].mxu0 %v2307
      %v2367 = vpop.f32.mrb[0].mxu0
      %v2368 = vadd.f32 %v2272, %v2367
      %v2369 = vpop.f32.mrb[0].mxu0
      %v2370 = vadd.f32 %v2272, %v2369
      %v2371 = vpop.f32.mrb[0].mxu0
      %v2372 = vadd.f32 %v2277, %v2371
      %v2373 = vpop.f32.mrb[0].mxu0
      %v2374 = vadd.f32 %v2277, %v2373
      %2375 = vmatprep.mubr.bf16.mxu0 0
      %2376 = vmatmul.mubr.bf16.gmra.mrb[0].mxu0 %v2308
      %v2377 = vpop.f32.mrb[0].mxu0
      %v2378 = vadd.f32 %v2282, %v2377
      %v2379 = vpop.f32.mrb[0].mxu0
      %v2380 = vadd.f32 %v2282, %v2379
      %v2381 = vpop.f32.mrb[0].mxu0
      %v2382 = vadd.f32 %v2287, %v2381
      %v2383 = vpop.f32.mrb[0].mxu0
      %v2384 = vadd.f32 %v2287, %v2383
      %2385 = vdwg.mxu0
      %2386 = vmatprep.subr.bf16.mxu0 %v2204
      %2387 = vmatpush1.bf16.msra.mxu0 %v2203
      %2388 = vmatprep.subr.bf16.mxu0 %v2208
      %2389 = vmatpush1.bf16.msra.mxu0 %v2207
      %2390 = vmatprep.subr.bf16.mxu0 %v2212
      %2391 = vmatpush1.bf16.msra.mxu0 %v2211
      %2392 = vmatprep.subr.bf16.mxu0 %v2216
      %2393 = vmatpush1.bf16.msra.mxu0 %v2215
      %2394 = vmatprep.subr.bf16.mxu0 %v2220
      %2395 = vmatpush1.bf16.msra.mxu0 %v2219
      %2396 = vmatprep.subr.bf16.mxu0 %v2224
      %2397 = vmatpush1.bf16.msra.mxu0 %v2223
      %2398 = vmatprep.subr.bf16.mxu0 %v2228
      %2399 = vmatpush1.bf16.msra.mxu0 %v2227
      %2400 = vmatprep.subr.bf16.mxu0 %v2232
      %2401 = vmatpush1.bf16.msra.mxu0 %v2231
      %2402 = vmatprep.subr.bf16.mxu0 0
      %2403 = vmatpush1.bf16.msra.mxu0 0
      %2404 = vmatprep.subr.bf16.mxu0 0
      %2405 = vmatpush1.bf16.msra.mxu0 0
      %2406 = vmatprep.subr.bf16.mxu0 0
      %2407 = vmatpush1.bf16.msra.mxu0 0
      %2408 = vmatprep.subr.bf16.mxu0 0
      %2409 = vmatpush1.bf16.msra.mxu0 0
      %2410 = vmatprep.subr.bf16.mxu0 0
      %2411 = vmatpush1.bf16.msra.mxu0 0
      %2412 = vmatprep.subr.bf16.mxu0 0
      %2413 = vmatpush1.bf16.msra.mxu0 0
      %2414 = vmatprep.subr.bf16.mxu0 0
      %2415 = vmatpush1.bf16.msra.mxu0 0
      %2416 = vmatprep.subr.bf16.mxu0 0
      %2417 = vmatpush1.bf16.msra.mxu0 0
      %2418 = vmatprep.mubr.bf16.mxu0 0
      %2419 = vmatmul.mubr.bf16.gmra.mrb[0].mxu0 %v2305
      %v2420 = vpop.f32.mrb[0].mxu0
      %v2421 = vadd.f32 %v2252, %v2420
      %v2422 = vpop.f32.mrb[0].mxu0
      %v2423 = vadd.f32 %v2252, %v2422
      %v2424 = vpop.f32.mrb[0].mxu0
      %v2425 = vadd.f32 %v2257, %v2424
      %v2426 = vpop.f32.mrb[0].mxu0
      %v2427 = vadd.f32 %v2257, %v2426
      %2428 = vmatprep.mubr.bf16.mxu0 0
      %2429 = vmatmul.mubr.bf16.gmra.mrb[0].mxu0 %v2306
      %v2430 = vpop.f32.mrb[0].mxu0
      %v2431 = vadd.f32 %v2262, %v2430
      %v2432 = vpop.f32.mrb[0].mxu0
      %v2433 = vadd.f32 %v2262, %v2432
      %v2434 = vpop.f32.mrb[0].mxu0
      %v2435 = vadd.f32 %v2267, %v2434
      %v2436 = vpop.f32.mrb[0].mxu0
      %v2437 = vadd.f32 %v2267, %v2436
      %2438 = vmatprep.mubr.bf16.mxu0 0
      %2439 = vmatmul.mubr.bf16.gmra.mrb[0].mxu0 %v2307
      %v2440 = vpop.f32.mrb[0].mxu0
      %v2441 = vadd.f32 %v2272, %v2440
      %v2442 = vpop.f32.mrb[0].mxu0
      %v2443 = vadd.f32 %v2272, %v2442
      %v2444 = vpop.f32.mrb[0].mxu0
      %v2445 = vadd.f32 %v2277, %v2444
      %v2446 = vpop.f32.mrb[0].mxu0
      %v2447 = vadd.f32 %v2277, %v2446
      %2448 = vmatprep.mubr.bf16.mxu0 0
      %2449 = vmatmul.mubr.bf16.gmra.mrb[0].mxu0 %v2308
      %v2450 = vpop.f32.mrb[0].mxu0
      %v2451 = vadd.f32 %v2282, %v2450
      %v2452 = vpop.f32.mrb[0].mxu0
      %v2453 = vadd.f32 %v2282, %v2452
      %v2454 = vpop.f32.mrb[0].mxu0
      %v2455 = vadd.f32 %v2287, %v2454
      %v2456 = vpop.f32.mrb[0].mxu0
      %v2457 = vadd.f32 %v2287, %v2456
      %2458 = vdwg.mxu0
      %v2459 = vmax.f32 %v2348, 0.0
      %v2460 = vmax.f32 %v2350, 0.0
      %v2461 = vmax.f32 %v2421, 0.0
      %v2462 = vmax.f32 %v2423, 0.0
      %v2463 = vmax.f32 %v2352, 0.0
      %v2464 = vmax.f32 %v2354, 0.0
      %v2465 = vmax.f32 %v2425, 0.0
      %v2466 = vmax.f32 %v2427, 0.0
      %v2467 = vmax.f32 %v2358, 0.0
      %v2468 = vmax.f32 %v2360, 0.0
      %v2469 = vmax.f32 %v2431, 0.0
      %v2470 = vmax.f32 %v2433, 0.0
      %v2471 = vmax.f32 %v2362, 0.0
      %v2472 = vmax.f32 %v2364, 0.0
      %v2473 = vmax.f32 %v2435, 0.0
      %v2474 = vmax.f32 %v2437, 0.0
      %v2475 = vmax.f32 %v2368, 0.0
      %v2476 = vmax.f32 %v2370, 0.0
      %v2477 = vmax.f32 %v2441, 0.0
      %v2478 = vmax.f32 %v2443, 0.0
      %v2479 = vmax.f32 %v2372, 0.0
      %v2480 = vmax.f32 %v2374, 0.0
      %v2481 = vmax.f32 %v2445, 0.0
      %v2482 = vmax.f32 %v2447, 0.0
      %v2483 = vmax.f32 %v2378, 0.0
      %v2484 = vmax.f32 %v2380, 0.0
      %v2485 = vmax.f32 %v2451, 0.0
      %v2486 = vmax.f32 %v2453, 0.0
      %v2487 = vmax.f32 %v2382, 0.0
      %v2488 = vmax.f32 %v2384, 0.0
      %v2489 = vmax.f32 %v2455, 0.0
      %v2490 = vmax.f32 %v2457, 0.0
      %v2491 = vpack.c.bf16 %v2463, %v2459
      %v2492 = vpack.c.bf16 %v2464, %v2460
      %v2493 = vpack.c.bf16 %v2465, %v2461
      %v2494 = vpack.c.bf16 %v2466, %v2462
      %v2495 = vpack.c.bf16 %v2471, %v2467
      %v2496 = vpack.c.bf16 %v2472, %v2468
      %v2497 = vpack.c.bf16 %v2473, %v2469
      %v2498 = vpack.c.bf16 %v2474, %v2470
      %v2499 = vpack.c.bf16 %v2479, %v2475
      %v2500 = vpack.c.bf16 %v2480, %v2476
      %v2501 = vpack.c.bf16 %v2481, %v2477
      %v2502 = vpack.c.bf16 %v2482, %v2478
      %v2503 = vpack.c.bf16 %v2487, %v2483
      %v2504 = vpack.c.bf16 %v2488, %v2484
      %v2505 = vpack.c.bf16 %v2489, %v2485
      %v2506 = vpack.c.bf16 %v2490, %v2486
      %v2507 = vld [vmem:[%s7] sm:$0xf]
      %v2508 = vld [vmem:[%s8] sm:$0xff]
      %2510 = vset.pattern.permute.xlu0 0
      %2511 = vperm.xlu0 %2510, %v2508
      %v2512 = vpop.permute.xlu0 %2511
      %vm2514 = vcmask 523264
      %v2516 = vsel %vm2514, %v2507, 0
      %2518 = vmatprep.subr.bf16.mxu0 %v2492
      %2519 = vmatpush1.bf16.msra.mxu0 %v2491
      %2520 = vmatprep.subr.bf16.mxu0 %v2496
      %2521 = vmatpush1.bf16.msra.mxu0 %v2495
      %2522 = vmatprep.subr.bf16.mxu0 %v2500
      %2523 = vmatpush1.bf16.msra.mxu0 %v2499
      %2524 = vmatprep.subr.bf16.mxu0 %v2504
      %2525 = vmatpush1.bf16.msra.mxu0 %v2503
      %2526 = vmatprep.subr.bf16.mxu0 0
      %2527 = vmatpush1.bf16.msra.mxu0 0
      %2528 = vmatprep.subr.bf16.mxu0 0
      %2529 = vmatpush1.bf16.msra.mxu0 0
      %2530 = vmatprep.subr.bf16.mxu0 0
      %2531 = vmatpush1.bf16.msra.mxu0 0
      %2532 = vmatprep.subr.bf16.mxu0 0
      %2533 = vmatpush1.bf16.msra.mxu0 0
      %2534 = vmatprep.subr.bf16.mxu0 0
      %2535 = vmatpush1.bf16.msra.mxu0 0
      %2536 = vmatprep.subr.bf16.mxu0 0
      %2537 = vmatpush1.bf16.msra.mxu0 0
      %2538 = vmatprep.subr.bf16.mxu0 0
      %2539 = vmatpush1.bf16.msra.mxu0 0
      %2540 = vmatprep.subr.bf16.mxu0 0
      %2541 = vmatpush1.bf16.msra.mxu0 0
      %2542 = vmatprep.subr.bf16.mxu0 0
      %2543 = vmatpush1.bf16.msra.mxu0 0
      %2544 = vmatprep.subr.bf16.mxu0 0
      %2545 = vmatpush1.bf16.msra.mxu0 0
      %2546 = vmatprep.subr.bf16.mxu0 0
      %2547 = vmatpush1.bf16.msra.mxu0 0
      %2548 = vmatprep.subr.bf16.mxu0 0
      %2549 = vmatpush1.bf16.msra.mxu0 0
      %2550 = vmatprep.mubr.bf16.mxu0 0
      %2551 = vmatmul.mubr.bf16.gmra.mrb[0].mxu0 %v2516
      %v2552 = vpop.f32.mrb[0].mxu0
      %v2553 = vadd.f32 %v2512, %v2552
      %v2554 = vpop.f32.mrb[0].mxu0
      %v2555 = vadd.f32 %v2512, %v2554
      %v2556 = vpop.f32.mrb[0].mxu0
      %v2557 = vpop.f32.mrb[0].mxu0
      %2558 = vdwg.mxu0
      %2559 = vmatprep.subr.bf16.mxu0 %v2494
      %2560 = vmatpush1.bf16.msra.mxu0 %v2493
      %2561 = vmatprep.subr.bf16.mxu0 %v2498
      %2562 = vmatpush1.bf16.msra.mxu0 %v2497
      %2563 = vmatprep.subr.bf16.mxu0 %v2502
      %2564 = vmatpush1.bf16.msra.mxu0 %v2501
      %2565 = vmatprep.subr.bf16.mxu0 %v2506
      %2566 = vmatpush1.bf16.msra.mxu0 %v2505
      %2567 = vmatprep.subr.bf16.mxu0 0
      %2568 = vmatpush1.bf16.msra.mxu0 0
      %2569 = vmatprep.subr.bf16.mxu0 0
      %2570 = vmatpush1.bf16.msra.mxu0 0
      %2571 = vmatprep.subr.bf16.mxu0 0
      %2572 = vmatpush1.bf16.msra.mxu0 0
      %2573 = vmatprep.subr.bf16.mxu0 0
      %2574 = vmatpush1.bf16.msra.mxu0 0
      %2575 = vmatprep.subr.bf16.mxu0 0
      %2576 = vmatpush1.bf16.msra.mxu0 0
      %2577 = vmatprep.subr.bf16.mxu0 0
      %2578 = vmatpush1.bf16.msra.mxu0 0
      %2579 = vmatprep.subr.bf16.mxu0 0
      %2580 = vmatpush1.bf16.msra.mxu0 0
      %2581 = vmatprep.subr.bf16.mxu0 0
      %2582 = vmatpush1.bf16.msra.mxu0 0
      %2583 = vmatprep.subr.bf16.mxu0 0
      %2584 = vmatpush1.bf16.msra.mxu0 0
      %2585 = vmatprep.subr.bf16.mxu0 0
      %2586 = vmatpush1.bf16.msra.mxu0 0
      %2587 = vmatprep.subr.bf16.mxu0 0
      %2588 = vmatpush1.bf16.msra.mxu0 0
      %2589 = vmatprep.subr.bf16.mxu0 0
      %2590 = vmatpush1.bf16.msra.mxu0 0
      %2591 = vmatprep.mubr.bf16.mxu0 0
      %2592 = vmatmul.mubr.bf16.gmra.mrb[0].mxu0 %v2516
      %v2593 = vpop.f32.mrb[0].mxu0
      %v2594 = vadd.f32 %v2512, %v2593
      %v2595 = vpop.f32.mrb[0].mxu0
      %v2596 = vadd.f32 %v2512, %v2595
      %v2597 = vpop.f32.mrb[0].mxu0
      %v2598 = vpop.f32.mrb[0].mxu0
      %2599 = vdwg.mxu0
      %2600 = vst [vmem:[%s370] sm:$0xff] %v2553
      %2601 = vst [vmem:[%s370 + $0x8] sm:$0xff] %v2555
      %2602 = vst [vmem:[%s370 + $0x10] sm:$0xff] %v2594
      %2603 = vst [vmem:[%s370 + $0x18] sm:$0xff] %v2596
      %s2604 = smul.u32 4, %s25
      %p2605 = scmp.lt.s32.totalorder %s24, 1
      %s2606 = scalar_select %p2605, %s24, 1
      %p2607 = scmp.lt.s32.totalorder %s2604, 3
      %s2608 = scalar_select %p2607, %s2604, 3
      %s2609 = smul.addr %s2606, 4
      %s2610 = sadd.s32 %s2608, %s2609
      %s2611 = smul.addr %s2610, 8
      %s2612 = scalar_lea.vmem %s9, %s2611
      // Predicated region
      $region57: #{er_estimate_forward.1} parent=55 // pred_check
        %p2613 = pneg %p248
      $region58: #{er_estimate_forward.1} parent=55 // pred_check_branch
        %2615 = sbr.rel (%p2613) target = $region60
      $region59: #{er_estimate_forward.1} parent=55 // pred_region
        %s2616 = smul.u32 4, %s25
      $region60: #{er_estimate_forward.1} parent=55 // pred_fallthru
        _
    $region56: #{er_estimate_forward.1} parent=5 // pred_fallthru
      _
    %p2617 = scmp.le.s32.totalorder 2, %s15
    // Predicated region
    $region61: #{er_estimate_forward.1} parent=5 // pred_check
      %p2618 = pneg %p2617
    $region62: #{er_estimate_forward.1} parent=5 // pred_check_branch
      %2620 = sbr.rel (%p2618) target = $region64
    $region63: #{er_estimate_forward.1} parent=5 // pred_region
      %s2621 = ssub.s32 %s15, 2
      // Predicated region
      $region65: #{er_estimate_forward.1} parent=63 // pred_check
        %p2622 = pneg %p254
      $region66: #{er_estimate_forward.1} parent=63 // pred_check_branch
        %2624 = sbr.rel (%p2622) target = $region68
      $region67: #{er_estimate_forward.1} parent=63 // pred_region
        %s2625 = smul.u32 4, %s27
        %p2626 = scmp.lt.s32.totalorder %s26, 1
        %s2627 = scalar_select %p2626, %s26, 1
        %p2628 = scmp.lt.s32.totalorder %s2625, 3
        %s2629 = scalar_select %p2628, %s2625, 3
        %s2630 = smul.addr %s2627, 4
        %s2631 = sadd.s32 %s2629, %s2630
        %s2632 = smul.addr %s2631, 8
        %s2633 = scalar_lea.vmem %s9, %s2632
      $region68: #{er_estimate_forward.1} parent=63 // pred_fallthru
        _
    $region64: #{er_estimate_forward.1} parent=5 // pred_fallthru
      _
  $region6: #{er_estimate_forward.1} parent=0 // loop_footer
    %s19 = sadd.s32 1, %s15
  $region7: #{er_estimate_forward.1} parent=0 // loop_footer_branch
    %14 = sbr.rel target = $region3
  $region8: #{er_estimate_forward.1} parent=0 // loop_exit
    _

</llo_original>
